<compile_context>
chip_gen: v5e
topology: v5e:2x2
jax: 0.10.0
libtpu: 0.0.40
codegen_flags: <defaults>
</compile_context>

<pallas_src>
import math
import functools

import jax
import jax.numpy as jnp
from jax import lax
from jax.experimental import pallas as pl
from jax.experimental.pallas import tpu as pltpu


# ----------------------------- in-kernel helpers -----------------------------

def _layernorm(x, gamma, beta, eps=1e-5):
    # x: (T, C) or (B, C) f32; gamma/beta: (1, C) f32
    mu = jnp.mean(x, axis=-1, keepdims=True)
    xc = x - mu
    var = jnp.mean(xc * xc, axis=-1, keepdims=True)
    return xc * lax.rsqrt(var + eps) * gamma + beta


def _new_gelu(x):
    # OpenAI tanh-approx GELU (NewGELU in the reference module), f32 on VPU/EUP
    c = math.sqrt(2.0 / math.pi)
    return 0.5 * x * (1.0 + jnp.tanh(c * (x + 0.044715 * x * x * x)))


# ------------------------- transformer block kernel --------------------------
# One grid step = one batch element.  LN, QKV projection, batched-head causal
# attention, output projection, MLP with NewGELU and both residuals are fused
# in a single kernel.  Matmuls are bf16->f32 on the MXU; elementwise math f32.

def _block_kernel(n_head,
                  x_ref,
                  ln1g_ref, ln1b_ref,
                  wqkv_ref, bqkv_ref,
                  wprh_ref, bpr_ref,
                  ln2g_ref, ln2b_ref,
                  wfc_ref, bfc_ref,
                  wp2_ref, bp2_ref,
                  out_ref):
    bf16 = jnp.bfloat16
    x = x_ref[0]                                  # (T, C) f32 residual stream
    T, C = x.shape
    H = n_head
    Dh = C // H
    scale = 1.0 / math.sqrt(Dh)

    # ---- attention branch: x + attn(ln_1(x)) ----
    h = _layernorm(x, ln1g_ref[...], ln1b_ref[...])                    # (T, C)
    qkv = jnp.dot(h.astype(bf16), wqkv_ref[...],
                  preferred_element_type=jnp.float32) + bqkv_ref[...]  # (T, 3C)
    q2d = qkv[:, 0 * C:1 * C]
    k2d = qkv[:, 1 * C:2 * C]
    v2d = qkv[:, 2 * C:3 * C]

    # head-major stacks (H, T, Dh); 1/sqrt(Dh) folded into q before QK^T
    qs = jnp.stack([q2d[:, hh * Dh:(hh + 1) * Dh] for hh in range(H)], axis=0) * scale
    ks = jnp.stack([k2d[:, hh * Dh:(hh + 1) * Dh] for hh in range(H)], axis=0)
    vs = jnp.stack([v2d[:, hh * Dh:(hh + 1) * Dh] for hh in range(H)], axis=0)

    # batched-head scores on the MXU
    att = jnp.einsum('hqd,hkd->hqk', qs.astype(bf16), ks.astype(bf16),
                     preferred_element_type=jnp.float32)               # (H, T, T)

    row = lax.broadcasted_iota(jnp.int32, (H, T, T), 1)
    col = lax.broadcasted_iota(jnp.int32, (H, T, T), 2)
    att = jnp.where(col <= row, att, -1e30)                            # causal mask

    att = att - jnp.max(att, axis=-1, keepdims=True)                   # f32 softmax
    p = jnp.exp(att)
    denom = jnp.sum(p, axis=-1, keepdims=True)                         # (H, T, 1)

    # unnormalized P @ V, then scale by approx reciprocal (EUP, cheap)
    y = jnp.einsum('hqk,hkd->hqd', p.astype(bf16), vs.astype(bf16),
                   preferred_element_type=jnp.float32)                 # (H, T, Dh)
    y = y * pl.reciprocal(denom, approx=True)

    # batched output projection: wproj pre-reshaped outside to (H, Dh, C);
    # the sum over heads replaces a lane-axis concatenate.
    y_proj = jnp.einsum('htd,hdc->htc', y.astype(bf16), wprh_ref[...],
                        preferred_element_type=jnp.float32)            # (H, T, C)
    attn_out = jnp.sum(y_proj, axis=0) + bpr_ref[...]                  # (T, C)
    x1 = x + attn_out

    # ---- MLP branch: x1 + mlp(ln_2(x1)) ----
    h2 = _layernorm(x1, ln2g_ref[...], ln2b_ref[...])
    a = jnp.dot(h2.astype(bf16), wfc_ref[...],
                preferred_element_type=jnp.float32) + bfc_ref[...]     # (T, 4C)
    a = _new_gelu(a)                                                   # f32
    m = jnp.dot(a.astype(bf16), wp2_ref[...],
                preferred_element_type=jnp.float32) + bp2_ref[...]     # (T, C)

    out_ref[0] = x1 + m


def run_block(x, klayer, n_head):
    B, T, C = x.shape
    H = n_head

    def full_spec(arr):
        shape = arr.shape
        return pl.BlockSpec(shape, lambda b, _s=shape: (0,) * len(_s))

    operands = (klayer["ln1_g"], klayer["ln1_b"], klayer["wqkv"], klayer["bqkv"],
                klayer["wprh"], klayer["bproj"], klayer["ln2_g"], klayer["ln2_b"],
                klayer["wfc"], klayer["bfc"], klayer["wproj2"], klayer["bproj2"])

    in_specs = [pl.BlockSpec((1, T, C), lambda b: (b, 0, 0))] + \
               [full_spec(a) for a in operands]
    out_spec = pl.BlockSpec((1, T, C), lambda b: (b, 0, 0))

    # size the scoped VMEM limit to actual resident weight+activation bytes
    operand_bytes = sum(int(a.size) * a.dtype.itemsize for a in operands)
    act_bytes = 4 * (T * C * 4 + T * 3 * C + H * T * T + T * 4 * C) * 4
    vmem_limit = int(min(96 * 1024 * 1024,
                         max(32 * 1024 * 1024, 2 * operand_bytes + act_bytes)))

    return pl.pallas_call(
        functools.partial(_block_kernel, n_head),
        out_shape=jax.ShapeDtypeStruct((B, T, C), jnp.float32),
        grid=(B,),
        in_specs=in_specs,
        out_specs=out_spec,
        compiler_params=pltpu.CompilerParams(
            dimension_semantics=("parallel",),
            vmem_limit_bytes=vmem_limit),
    )(x, *operands)


# --------------------- final LayerNorm + tied lm_head ------------------------
# labels=None path: logits only for the last position.  Tied weight is passed
# transposed as (C, V) bf16 and the vocab axis is tiled with a grid so each
# step does a lane-dense (B, tile_v) MXU matmul with pipelined weight DMA.

def _head_kernel(x_ref, g_ref, b_ref, wt_ref, out_ref):
    # LayerNorm recomputed per V-tile: (B, C) is tiny vs. the (C, tile_v) DMA.
    xn = _layernorm(x_ref[...], g_ref[...], b_ref[...])                # (B, C) f32
    out_ref[...] = jnp.dot(xn.astype(jnp.bfloat16), wt_ref[...],
                           preferred_element_type=jnp.float32)         # (B, tile_v)


def _pick_vocab_tile(V):
    for tv in (512, 256, 128):
        if V % tv == 0:
            return tv
    return V


def run_head(x_last, lnf_g, lnf_b, wte_t):
    B, C = x_last.shape
    V = wte_t.shape[1]
    tv = _pick_vocab_tile(V)
    return pl.pallas_call(
        _head_kernel,
        out_shape=jax.ShapeDtypeStruct((B, V), jnp.float32),
        grid=(V // tv,),
        in_specs=[
            pl.BlockSpec((B, C), lambda j: (0, 0)),
            pl.BlockSpec((1, C), lambda j: (0, 0)),
            pl.BlockSpec((1, C), lambda j: (0, 0)),
            pl.BlockSpec((C, tv), lambda j: (0, j)),
        ],
        out_specs=pl.BlockSpec((B, tv), lambda j: (0, j)),
        compiler_params=pltpu.CompilerParams(
            dimension_semantics=("parallel",)),
    )(x_last, lnf_g, lnf_b, wte_t)


# ------------------------------- model wrapper --------------------------------

def init_params(key, vocab_size, block_size, n_embd, n_layer):
    std = 0.02
    resid_std = 0.02 / math.sqrt(2 * n_layer)
    C = n_embd
    keys = iter(jax.random.split(key, 4 + 4 * n_layer))

    params = {
        # weight tying: wte is also the lm_head weight
        "wte": jax.random.normal(next(keys), (vocab_size, C), jnp.float32) * std,
        "wpe": jax.random.normal(next(keys), (block_size, C), jnp.float32) * std,
        "ln_f_g": jnp.ones((1, C), jnp.float32),
        "ln_f_b": jnp.zeros((1, C), jnp.float32),
        "layers": [],
    }
    for _ in range(n_layer):
        layer = {
            "ln1_g": jnp.ones((1, C), jnp.float32),
            "ln1_b": jnp.zeros((1, C), jnp.float32),
            "wqkv": jax.random.normal(next(keys), (C, 3 * C), jnp.float32) * std,
            "bqkv": jnp.zeros((1, 3 * C), jnp.float32),
            "wproj": jax.random.normal(next(keys), (C, C), jnp.float32) * resid_std,
            "bproj": jnp.zeros((1, C), jnp.float32),
            "ln2_g": jnp.ones((1, C), jnp.float32),
            "ln2_b": jnp.zeros((1, C), jnp.float32),
            "wfc": jax.random.normal(next(keys), (C, 4 * C), jnp.float32) * std,
            "bfc": jnp.zeros((1, 4 * C), jnp.float32),
            "wproj2": jax.random.normal(next(keys), (4 * C, C), jnp.float32) * resid_std,
            "bproj2": jnp.zeros((1, C), jnp.float32),
        }
        params["layers"].append(layer)
    return params


def prepare_kernel_params(params, n_head):
    """One-time, kernel-ready view of the params: bf16 matmul weights, the
    attention output projection reshaped head-major (H, Dh, C), and the tied
    lm_head weight transposed to (C, V) bf16.  Done once outside the per-token
    forward so generate-style loops do not re-cast weights every step."""
    bf16 = jnp.bfloat16
    C = params["wte"].shape[1]
    H = n_head
    Dh = C // H
    klayers = []
    for layer in params["layers"]:
        klayers.append({
            "ln1_g": layer["ln1_g"], "ln1_b": layer["ln1_b"],
            "wqkv": layer["wqkv"].astype(bf16),                    # (C, 3C)
            "bqkv": layer["bqkv"],
            "wprh": layer["wproj"].astype(bf16).reshape(H, Dh, C),  # (H, Dh, C)
            "bproj": layer["bproj"],
            "ln2_g": layer["ln2_g"], "ln2_b": layer["ln2_b"],
            "wfc": layer["wfc"].astype(bf16),                      # (C, 4C)
            "bfc": layer["bfc"],
            "wproj2": layer["wproj2"].astype(bf16),                # (4C, C)
            "bproj2": layer["bproj2"],
        })
    return {
        "wte": params["wte"],                                      # f32, gather
        "wpe": params["wpe"],
        "ln_f_g": params["ln_f_g"], "ln_f_b": params["ln_f_b"],
        "wte_t": params["wte"].astype(bf16).T,                     # (C, V) tied
        "layers": klayers,
    }


def gpt_forward(idx, kparams, n_head):
    # labels=None, return_logits=True path of GPT.forward
    B, T = idx.shape
    # embedding lookup is a data-dependent gather -> plain JAX glue
    tok_emb = jnp.take(kparams["wte"], idx, axis=0)        # (B, T, C)
    pos_emb = kparams["wpe"][:T]                           # (T, C)
    x = (tok_emb + pos_emb[None, :, :]).astype(jnp.float32)
    for klayer in kparams["layers"]:
        x = run_block(x, klayer, n_head)
    x_last = x[:, -1, :]                                   # (B, C)
    logits = run_head(x_last, kparams["ln_f_g"], kparams["ln_f_b"],
                      kparams["wte_t"])
    return logits[:, None, :]                              # (B, 1, vocab)


# ----------------------------------- main -------------------------------------

if __name__ == "__main__":
    vocab_size = 128
    block_size = 16
    n_embd = 32
    n_head = 4
    n_layer = 2
    B, T = 2, 8

    key = jax.random.PRNGKey(0)
    pkey, dkey = jax.random.split(key)
    params = init_params(pkey, vocab_size, block_size, n_embd, n_layer)
    kparams = prepare_kernel_params(params, n_head)
    idx = jax.random.randint(dkey, (B, T), 0, vocab_size, dtype=jnp.int32)

    fwd = jax.jit(lambda i, p: gpt_forward(i, p, n_head))
    logits = fwd(idx, kparams)
    logits = jax.block_until_ready(logits)
    assert logits.shape == (B, 1, vocab_size)
    assert bool(jnp.all(jnp.isfinite(logits)))
    print("KERNEL_OK")
</pallas_src>

<mosaic_0001>
module attributes {stable_mosaic.version = 11 : i64} {
  func.func @_head_kernel(%arg0: i32, %arg1: memref<2x32xf32, #tpu.memory_space<vmem>>, %arg2: memref<1x32xf32, #tpu.memory_space<vmem>>, %arg3: memref<1x32xf32, #tpu.memory_space<vmem>>, %arg4: memref<32x128xbf16, #tpu.memory_space<vmem>>, %arg5: memref<2x128xf32, #tpu.memory_space<vmem>>) attributes {dimension_semantics = [#tpu.dimension_semantics<parallel>], iteration_bounds = array<i64: 1>, scalar_prefetch = 0 : i64, scratch_operands = 0 : i64, tpu.core_type = #tpu.core_type<tc>, window_params = [{pipeline_mode = #tpu.pipeline_mode<synchronous>, transform_indices = @transform_0, window_bounds = array<i64: 2, 32>}, {pipeline_mode = #tpu.pipeline_mode<synchronous>, transform_indices = @transform_1, window_bounds = array<i64: 1, 32>}, {pipeline_mode = #tpu.pipeline_mode<synchronous>, transform_indices = @transform_2, window_bounds = array<i64: 1, 32>}, {transform_indices = @transform_3, window_bounds = array<i64: 32, 128>}, {transform_indices = @transform_4, window_bounds = array<i64: 2, 128>}]} {
    %c0 = arith.constant 0 : index
    %c0_0 = arith.constant 0 : index
    %0 = vector.load %arg1[%c0, %c0_0] : memref<2x32xf32, #tpu.memory_space<vmem>>, vector<2x32xf32>
    %c0_1 = arith.constant 0 : index
    %c0_2 = arith.constant 0 : index
    %1 = vector.load %arg2[%c0_1, %c0_2] : memref<1x32xf32, #tpu.memory_space<vmem>>, vector<1x32xf32>
    %c0_3 = arith.constant 0 : index
    %c0_4 = arith.constant 0 : index
    %2 = vector.load %arg3[%c0_3, %c0_4] : memref<1x32xf32, #tpu.memory_space<vmem>>, vector<1x32xf32>
    %cst = arith.constant dense<0.000000e+00> : vector<2xf32>
    %3 = vector.multi_reduction <add>, %0, %cst [1] : vector<2x32xf32> to vector<2xf32>
    %4 = vector.shape_cast %3 : vector<2xf32> to vector<2x1xf32>
    %cst_5 = arith.constant 3.200000e+01 : f32
    %5 = vector.broadcast %cst_5 : f32 to vector<2x1xf32>
    %6 = arith.divf %4, %5 : vector<2x1xf32>
    %7 = vector.broadcast %6 : vector<2x1xf32> to vector<2x32xf32>
    %8 = arith.subf %0, %7 : vector<2x32xf32>
    %9 = arith.mulf %8, %8 : vector<2x32xf32>
    %cst_6 = arith.constant dense<0.000000e+00> : vector<2xf32>
    %10 = vector.multi_reduction <add>, %9, %cst_6 [1] : vector<2x32xf32> to vector<2xf32>
    %11 = vector.shape_cast %10 : vector<2xf32> to vector<2x1xf32>
    %cst_7 = arith.constant 3.200000e+01 : f32
    %12 = vector.broadcast %cst_7 : f32 to vector<2x1xf32>
    %13 = arith.divf %11, %12 : vector<2x1xf32>
    %cst_8 = arith.constant 9.99999974E-6 : f32
    %14 = vector.broadcast %cst_8 : f32 to vector<2x1xf32>
    %15 = arith.addf %13, %14 : vector<2x1xf32>
    %16 = math.rsqrt %15 : vector<2x1xf32>
    %17 = vector.broadcast %16 : vector<2x1xf32> to vector<2x32xf32>
    %18 = arith.mulf %8, %17 : vector<2x32xf32>
    %19 = vector.broadcast %1 : vector<1x32xf32> to vector<2x32xf32>
    %20 = arith.mulf %18, %19 : vector<2x32xf32>
    %21 = vector.broadcast %2 : vector<1x32xf32> to vector<2x32xf32>
    %22 = arith.addf %20, %21 : vector<2x32xf32>
    %23 = arith.truncf %22 : vector<2x32xf32> to vector<2x32xbf16>
    %c0_9 = arith.constant 0 : index
    %c0_10 = arith.constant 0 : index
    %24 = vector.load %arg4[%c0_9, %c0_10] : memref<32x128xbf16, #tpu.memory_space<vmem>>, vector<32x128xbf16>
    %cst_11 = arith.constant dense<0.000000e+00> : vector<2x128xf32>
    %25 = tpu.matmul %23, %24, %cst_11 {dimension_numbers = #tpu.dot_dimension_numbers<[1], [0], [0], [1], [0, 0, 1, 1], [], []>} : vector<2x32xbf16>, vector<32x128xbf16>, vector<2x128xf32> -> vector<2x128xf32>
    %c0_12 = arith.constant 0 : index
    %c0_13 = arith.constant 0 : index
    %26 = vector.load %arg5[%c0_12, %c0_13] : memref<2x128xf32, #tpu.memory_space<vmem>>, vector<2x128xf32>
    tpu.vector_store %arg5[%c0_12, %c0_13], %25 {strides = array<i32>} : memref<2x128xf32, #tpu.memory_space<vmem>>, vector<2x128xf32>,
    return
  }
  func.func @transform_0(%arg0: i32) -> (i32, i32) {
    %c0_i32 = arith.constant 0 : i32
    %c0_i32_0 = arith.constant 0 : i32
    %c0_i32_1 = arith.constant 0 : i32
    return %c0_i32, %c0_i32_0 : i32, i32
  }
  func.func @transform_1(%arg0: i32) -> (i32, i32) {
    %c0_i32 = arith.constant 0 : i32
    %c0_i32_0 = arith.constant 0 : i32
    %c0_i32_1 = arith.constant 0 : i32
    return %c0_i32, %c0_i32_0 : i32, i32
  }
  func.func @transform_2(%arg0: i32) -> (i32, i32) {
    %c0_i32 = arith.constant 0 : i32
    %c0_i32_0 = arith.constant 0 : i32
    %c0_i32_1 = arith.constant 0 : i32
    return %c0_i32, %c0_i32_0 : i32, i32
  }
  func.func @transform_3(%arg0: i32) -> (i32, i32) {
    %c0_i32 = arith.constant 0 : i32
    %c0_i32_0 = arith.constant 0 : i32
    return %c0_i32, %arg0 : i32, i32
  }
  func.func @transform_4(%arg0: i32) -> (i32, i32) {
    %c0_i32 = arith.constant 0 : i32
    %c0_i32_0 = arith.constant 0 : i32
    return %c0_i32, %arg0 : i32, i32
  }
}

module attributes {stable_mosaic.version = 11 : i64} {
  func.func @_block_kernel(%arg0: i32, %arg1: memref<1x8x32xf32, #tpu.memory_space<vmem>>, %arg2: memref<1x32xf32, #tpu.memory_space<vmem>>, %arg3: memref<1x32xf32, #tpu.memory_space<vmem>>, %arg4: memref<32x96xbf16, #tpu.memory_space<vmem>>, %arg5: memref<1x96xf32, #tpu.memory_space<vmem>>, %arg6: memref<4x8x32xbf16, #tpu.memory_space<vmem>>, %arg7: memref<1x32xf32, #tpu.memory_space<vmem>>, %arg8: memref<1x32xf32, #tpu.memory_space<vmem>>, %arg9: memref<1x32xf32, #tpu.memory_space<vmem>>, %arg10: memref<32x128xbf16, #tpu.memory_space<vmem>>, %arg11: memref<1x128xf32, #tpu.memory_space<vmem>>, %arg12: memref<128x32xbf16, #tpu.memory_space<vmem>>, %arg13: memref<1x32xf32, #tpu.memory_space<vmem>>, %arg14: memref<1x8x32xf32, #tpu.memory_space<vmem>>) attributes {dimension_semantics = [#tpu.dimension_semantics<parallel>], iteration_bounds = array<i64: 2>, scalar_prefetch = 0 : i64, scratch_operands = 0 : i64, tpu.core_type = #tpu.core_type<tc>, window_params = [{transform_indices = @transform_0, window_bounds = array<i64: 1, 8, 32>}, {pipeline_mode = #tpu.pipeline_mode<synchronous>, transform_indices = @transform_1, window_bounds = array<i64: 1, 32>}, {pipeline_mode = #tpu.pipeline_mode<synchronous>, transform_indices = @transform_2, window_bounds = array<i64: 1, 32>}, {pipeline_mode = #tpu.pipeline_mode<synchronous>, transform_indices = @transform_3, window_bounds = array<i64: 32, 96>}, {pipeline_mode = #tpu.pipeline_mode<synchronous>, transform_indices = @transform_4, window_bounds = array<i64: 1, 96>}, {pipeline_mode = #tpu.pipeline_mode<synchronous>, transform_indices = @transform_5, window_bounds = array<i64: 4, 8, 32>}, {pipeline_mode = #tpu.pipeline_mode<synchronous>, transform_indices = @transform_6, window_bounds = array<i64: 1, 32>}, {pipeline_mode = #tpu.pipeline_mode<synchronous>, transform_indices = @transform_7, window_bounds = array<i64: 1, 32>}, {pipeline_mode = #tpu.pipeline_mode<synchronous>, transform_indices = @transform_8, window_bounds = array<i64: 1, 32>}, {pipeline_mode = #tpu.pipeline_mode<synchronous>, transform_indices = @transform_9, window_bounds = array<i64: 32, 128>}, {pipeline_mode = #tpu.pipeline_mode<synchronous>, transform_indices = @transform_10, window_bounds = array<i64: 1, 128>}, {pipeline_mode = #tpu.pipeline_mode<synchronous>, transform_indices = @transform_11, window_bounds = array<i64: 128, 32>}, {pipeline_mode = #tpu.pipeline_mode<synchronous>, transform_indices = @transform_12, window_bounds = array<i64: 1, 32>}, {transform_indices = @transform_13, window_bounds = array<i64: 1, 8, 32>}]} {
    %c0 = arith.constant 0 : index
    %c0_0 = arith.constant 0 : index
    %c0_1 = arith.constant 0 : index
    %0 = vector.load %arg1[%c0, %c0_0, %c0_1] : memref<1x8x32xf32, #tpu.memory_space<vmem>>, vector<1x8x32xf32>
    %1 = vector.shape_cast %0 : vector<1x8x32xf32> to vector<8x32xf32>
    %c0_2 = arith.constant 0 : index
    %c0_3 = arith.constant 0 : index
    %2 = vector.load %arg2[%c0_2, %c0_3] : memref<1x32xf32, #tpu.memory_space<vmem>>, vector<1x32xf32>
    %c0_4 = arith.constant 0 : index
    %c0_5 = arith.constant 0 : index
    %3 = vector.load %arg3[%c0_4, %c0_5] : memref<1x32xf32, #tpu.memory_space<vmem>>, vector<1x32xf32>
    %cst = arith.constant dense<0.000000e+00> : vector<8xf32>
    %4 = vector.multi_reduction <add>, %1, %cst [1] : vector<8x32xf32> to vector<8xf32>
    %5 = vector.shape_cast %4 : vector<8xf32> to vector<8x1xf32>
    %cst_6 = arith.constant 3.200000e+01 : f32
    %6 = vector.broadcast %cst_6 : f32 to vector<8x1xf32>
    %7 = arith.divf %5, %6 : vector<8x1xf32>
    %8 = vector.broadcast %7 : vector<8x1xf32> to vector<8x32xf32>
    %9 = arith.subf %1, %8 : vector<8x32xf32>
    %10 = arith.mulf %9, %9 : vector<8x32xf32>
    %cst_7 = arith.constant dense<0.000000e+00> : vector<8xf32>
    %11 = vector.multi_reduction <add>, %10, %cst_7 [1] : vector<8x32xf32> to vector<8xf32>
    %12 = vector.shape_cast %11 : vector<8xf32> to vector<8x1xf32>
    %cst_8 = arith.constant 3.200000e+01 : f32
    %13 = vector.broadcast %cst_8 : f32 to vector<8x1xf32>
    %14 = arith.divf %12, %13 : vector<8x1xf32>
    %cst_9 = arith.constant 9.99999974E-6 : f32
    %15 = vector.broadcast %cst_9 : f32 to vector<8x1xf32>
    %16 = arith.addf %14, %15 : vector<8x1xf32>
    %17 = math.rsqrt %16 : vector<8x1xf32>
    %18 = vector.broadcast %17 : vector<8x1xf32> to vector<8x32xf32>
    %19 = arith.mulf %9, %18 : vector<8x32xf32>
    %20 = vector.broadcast %2 : vector<1x32xf32> to vector<8x32xf32>
    %21 = arith.mulf %19, %20 : vector<8x32xf32>
    %22 = vector.broadcast %3 : vector<1x32xf32> to vector<8x32xf32>
    %23 = arith.addf %21, %22 : vector<8x32xf32>
    %24 = arith.truncf %23 : vector<8x32xf32> to vector<8x32xbf16>
    %c0_10 = arith.constant 0 : index
    %c0_11 = arith.constant 0 : index
    %25 = vector.load %arg4[%c0_10, %c0_11] : memref<32x96xbf16, #tpu.memory_space<vmem>>, vector<32x96xbf16>
    %cst_12 = arith.constant dense<0.000000e+00> : vector<8x96xf32>
    %26 = tpu.matmul %24, %25, %cst_12 {dimension_numbers = #tpu.dot_dimension_numbers<[1], [0], [0], [1], [0, 0, 1, 1], [], []>} : vector<8x32xbf16>, vector<32x96xbf16>, vector<8x96xf32> -> vector<8x96xf32>
    %c0_13 = arith.constant 0 : index
    %c0_14 = arith.constant 0 : index
    %27 = vector.load %arg5[%c0_13, %c0_14] : memref<1x96xf32, #tpu.memory_space<vmem>>, vector<1x96xf32>
    %28 = vector.broadcast %27 : vector<1x96xf32> to vector<8x96xf32>
    %29 = arith.addf %26, %28 : vector<8x96xf32>
    %30 = vector.extract_strided_slice %29 {offsets = [0, 0], sizes = [8, 32], strides = [1, 1]} : vector<8x96xf32> to vector<8x32xf32>
    %31 = vector.extract_strided_slice %29 {offsets = [0, 32], sizes = [8, 32], strides = [1, 1]} : vector<8x96xf32> to vector<8x32xf32>
    %32 = vector.extract_strided_slice %29 {offsets = [0, 64], sizes = [8, 32], strides = [1, 1]} : vector<8x96xf32> to vector<8x32xf32>
    %33 = vector.extract_strided_slice %30 {offsets = [0, 0], sizes = [8, 8], strides = [1, 1]} : vector<8x32xf32> to vector<8x8xf32>
    %34 = vector.extract_strided_slice %30 {offsets = [0, 8], sizes = [8, 8], strides = [1, 1]} : vector<8x32xf32> to vector<8x8xf32>
    %35 = vector.extract_strided_slice %30 {offsets = [0, 16], sizes = [8, 8], strides = [1, 1]} : vector<8x32xf32> to vector<8x8xf32>
    %36 = vector.extract_strided_slice %30 {offsets = [0, 24], sizes = [8, 8], strides = [1, 1]} : vector<8x32xf32> to vector<8x8xf32>
    %37 = vector.shape_cast %33 : vector<8x8xf32> to vector<1x8x8xf32>
    %38 = vector.shape_cast %34 : vector<8x8xf32> to vector<1x8x8xf32>
    %39 = vector.shape_cast %35 : vector<8x8xf32> to vector<1x8x8xf32>
    %40 = vector.shape_cast %36 : vector<8x8xf32> to vector<1x8x8xf32>
    %41 = tpu.concatenate %37, %38, %39, %40 in 0 : vector<1x8x8xf32>, vector<1x8x8xf32>, vector<1x8x8xf32>, vector<1x8x8xf32> -> vector<4x8x8xf32>
    %cst_15 = arith.constant 0.353553385 : f32
    %42 = vector.broadcast %cst_15 : f32 to vector<4x8x8xf32>
    %43 = arith.mulf %41, %42 : vector<4x8x8xf32>
    %44 = vector.extract_strided_slice %31 {offsets = [0, 0], sizes = [8, 8], strides = [1, 1]} : vector<8x32xf32> to vector<8x8xf32>
    %45 = vector.extract_strided_slice %31 {offsets = [0, 8], sizes = [8, 8], strides = [1, 1]} : vector<8x32xf32> to vector<8x8xf32>
    %46 = vector.extract_strided_slice %31 {offsets = [0, 16], sizes = [8, 8], strides = [1, 1]} : vector<8x32xf32> to vector<8x8xf32>
    %47 = vector.extract_strided_slice %31 {offsets = [0, 24], sizes = [8, 8], strides = [1, 1]} : vector<8x32xf32> to vector<8x8xf32>
    %48 = vector.shape_cast %44 : vector<8x8xf32> to vector<1x8x8xf32>
    %49 = vector.shape_cast %45 : vector<8x8xf32> to vector<1x8x8xf32>
    %50 = vector.shape_cast %46 : vector<8x8xf32> to vector<1x8x8xf32>
    %51 = vector.shape_cast %47 : vector<8x8xf32> to vector<1x8x8xf32>
    %52 = tpu.concatenate %48, %49, %50, %51 in 0 : vector<1x8x8xf32>, vector<1x8x8xf32>, vector<1x8x8xf32>, vector<1x8x8xf32> -> vector<4x8x8xf32>
    %53 = vector.extract_strided_slice %32 {offsets = [0, 0], sizes = [8, 8], strides = [1, 1]} : vector<8x32xf32> to vector<8x8xf32>
    %54 = vector.extract_strided_slice %32 {offsets = [0, 8], sizes = [8, 8], strides = [1, 1]} : vector<8x32xf32> to vector<8x8xf32>
    %55 = vector.extract_strided_slice %32 {offsets = [0, 16], sizes = [8, 8], strides = [1, 1]} : vector<8x32xf32> to vector<8x8xf32>
    %56 = vector.extract_strided_slice %32 {offsets = [0, 24], sizes = [8, 8], strides = [1, 1]} : vector<8x32xf32> to vector<8x8xf32>
    %57 = vector.shape_cast %53 : vector<8x8xf32> to vector<1x8x8xf32>
    %58 = vector.shape_cast %54 : vector<8x8xf32> to vector<1x8x8xf32>
    %59 = vector.shape_cast %55 : vector<8x8xf32> to vector<1x8x8xf32>
    %60 = vector.shape_cast %56 : vector<8x8xf32> to vector<1x8x8xf32>
    %61 = tpu.concatenate %57, %58, %59, %60 in 0 : vector<1x8x8xf32>, vector<1x8x8xf32>, vector<1x8x8xf32>, vector<1x8x8xf32> -> vector<4x8x8xf32>
    %62 = arith.truncf %43 : vector<4x8x8xf32> to vector<4x8x8xbf16>
    %63 = arith.truncf %52 : vector<4x8x8xf32> to vector<4x8x8xbf16>
    "tpu.trace_start"() <{level = 10 : i32, message = "hqd,hkd->hqk"}> : () -> ()
    %cst_16 = arith.constant dense<0.000000e+00> : vector<4x8x8xf32>
    %64 = tpu.matmul %62, %63, %cst_16 {dimension_numbers = #tpu.dot_dimension_numbers<[2], [2], [1], [1], [0, 0, 0, 1, 1, 1], [0], [0]>} : vector<4x8x8xbf16>, vector<4x8x8xbf16>, vector<4x8x8xf32> -> vector<4x8x8xf32>
    "tpu.trace_stop"() : () -> ()
    %65 = tpu.iota {dimensions = array<i32: 1>} : vector<4x8x8xi32>
    %66 = tpu.iota {dimensions = array<i32: 2>} : vector<4x8x8xi32>
    %67 = arith.cmpi sle, %66, %65 : vector<4x8x8xi32>
    %cst_17 = arith.constant -1.000000e+30 : f32
    %68 = vector.broadcast %cst_17 : f32 to vector<4x8x8xf32>
    %69 = arith.select %67, %64, %68 : vector<4x8x8xi1>, vector<4x8x8xf32>
    %cst_18 = arith.constant dense<0xFF800000> : vector<4x8xf32>
    %70 = vector.multi_reduction <maximumf>, %69, %cst_18 [2] : vector<4x8x8xf32> to vector<4x8xf32>
    %71 = vector.shape_cast %70 : vector<4x8xf32> to vector<4x8x1xf32>
    %72 = vector.broadcast %71 : vector<4x8x1xf32> to vector<4x8x8xf32>
    %73 = arith.subf %69, %72 : vector<4x8x8xf32>
    %74 = math.exp %73 : vector<4x8x8xf32>
    %cst_19 = arith.constant dense<0.000000e+00> : vector<4x8xf32>
    %75 = vector.multi_reduction <add>, %74, %cst_19 [2] : vector<4x8x8xf32> to vector<4x8xf32>
    %76 = vector.shape_cast %75 : vector<4x8xf32> to vector<4x8x1xf32>
    %77 = arith.truncf %74 : vector<4x8x8xf32> to vector<4x8x8xbf16>
    %78 = arith.truncf %61 : vector<4x8x8xf32> to vector<4x8x8xbf16>
    "tpu.trace_start"() <{level = 10 : i32, message = "hqk,hkd->hqd"}> : () -> ()
    %cst_20 = arith.constant dense<0.000000e+00> : vector<4x8x8xf32>
    %79 = tpu.matmul %77, %78, %cst_20 {dimension_numbers = #tpu.dot_dimension_numbers<[2], [1], [1], [2], [0, 0, 0, 1, 1, 2], [0], [0]>} : vector<4x8x8xbf16>, vector<4x8x8xbf16>, vector<4x8x8xf32> -> vector<4x8x8xf32>
    "tpu.trace_stop"() : () -> ()
    %80 = tpu.reciprocal %76 {approx = true} : vector<4x8x1xf32> -> vector<4x8x1xf32>
    %81 = vector.broadcast %80 : vector<4x8x1xf32> to vector<4x8x8xf32>
    %82 = arith.mulf %79, %81 : vector<4x8x8xf32>
    %83 = arith.truncf %82 : vector<4x8x8xf32> to vector<4x8x8xbf16>
    %c0_21 = arith.constant 0 : index
    %c0_22 = arith.constant 0 : index
    %c0_23 = arith.constant 0 : index
    %84 = vector.load %arg6[%c0_21, %c0_22, %c0_23] : memref<4x8x32xbf16, #tpu.memory_space<vmem>>, vector<4x8x32xbf16>
    "tpu.trace_start"() <{level = 10 : i32, message = "htd,hdc->htc"}> : () -> ()
    %cst_24 = arith.constant dense<0.000000e+00> : vector<4x8x32xf32>
    %85 = tpu.matmul %83, %84, %cst_24 {dimension_numbers = #tpu.dot_dimension_numbers<[2], [1], [1], [2], [0, 0, 0, 1, 1, 2], [0], [0]>} : vector<4x8x8xbf16>, vector<4x8x32xbf16>, vector<4x8x32xf32> -> vector<4x8x32xf32>
    "tpu.trace_stop"() : () -> ()
    %cst_25 = arith.constant dense<0.000000e+00> : vector<8x32xf32>
    %86 = vector.multi_reduction <add>, %85, %cst_25 [0] : vector<4x8x32xf32> to vector<8x32xf32>
    %c0_26 = arith.constant 0 : index
    %c0_27 = arith.constant 0 : index
    %87 = vector.load %arg7[%c0_26, %c0_27] : memref<1x32xf32, #tpu.memory_space<vmem>>, vector<1x32xf32>
    %88 = vector.broadcast %87 : vector<1x32xf32> to vector<8x32xf32>
    %89 = arith.addf %86, %88 : vector<8x32xf32>
    %90 = arith.addf %1, %89 : vector<8x32xf32>
    %c0_28 = arith.constant 0 : index
    %c0_29 = arith.constant 0 : index
    %91 = vector.load %arg8[%c0_28, %c0_29] : memref<1x32xf32, #tpu.memory_space<vmem>>, vector<1x32xf32>
    %c0_30 = arith.constant 0 : index
    %c0_31 = arith.constant 0 : index
    %92 = vector.load %arg9[%c0_30, %c0_31] : memref<1x32xf32, #tpu.memory_space<vmem>>, vector<1x32xf32>
    %cst_32 = arith.constant dense<0.000000e+00> : vector<8xf32>
    %93 = vector.multi_reduction <add>, %90, %cst_32 [1] : vector<8x32xf32> to vector<8xf32>
    %94 = vector.shape_cast %93 : vector<8xf32> to vector<8x1xf32>
    %cst_33 = arith.constant 3.200000e+01 : f32
    %95 = vector.broadcast %cst_33 : f32 to vector<8x1xf32>
    %96 = arith.divf %94, %95 : vector<8x1xf32>
    %97 = vector.broadcast %96 : vector<8x1xf32> to vector<8x32xf32>
    %98 = arith.subf %90, %97 : vector<8x32xf32>
    %99 = arith.mulf %98, %98 : vector<8x32xf32>
    %cst_34 = arith.constant dense<0.000000e+00> : vector<8xf32>
    %100 = vector.multi_reduction <add>, %99, %cst_34 [1] : vector<8x32xf32> to vector<8xf32>
    %101 = vector.shape_cast %100 : vector<8xf32> to vector<8x1xf32>
    %cst_35 = arith.constant 3.200000e+01 : f32
    %102 = vector.broadcast %cst_35 : f32 to vector<8x1xf32>
    %103 = arith.divf %101, %102 : vector<8x1xf32>
    %cst_36 = arith.constant 9.99999974E-6 : f32
    %104 = vector.broadcast %cst_36 : f32 to vector<8x1xf32>
    %105 = arith.addf %103, %104 : vector<8x1xf32>
    %106 = math.rsqrt %105 : vector<8x1xf32>
    %107 = vector.broadcast %106 : vector<8x1xf32> to vector<8x32xf32>
    %108 = arith.mulf %98, %107 : vector<8x32xf32>
    %109 = vector.broadcast %91 : vector<1x32xf32> to vector<8x32xf32>
    %110 = arith.mulf %108, %109 : vector<8x32xf32>
    %111 = vector.broadcast %92 : vector<1x32xf32> to vector<8x32xf32>
    %112 = arith.addf %110, %111 : vector<8x32xf32>
    %113 = arith.truncf %112 : vector<8x32xf32> to vector<8x32xbf16>
    %c0_37 = arith.constant 0 : index
    %c0_38 = arith.constant 0 : index
    %114 = vector.load %arg10[%c0_37, %c0_38] : memref<32x128xbf16, #tpu.memory_space<vmem>>, vector<32x128xbf16>
    %cst_39 = arith.constant dense<0.000000e+00> : vector<8x128xf32>
    %115 = tpu.matmul %113, %114, %cst_39 {dimension_numbers = #tpu.dot_dimension_numbers<[1], [0], [0], [1], [0, 0, 1, 1], [], []>} : vector<8x32xbf16>, vector<32x128xbf16>, vector<8x128xf32> -> vector<8x128xf32>
    %c0_40 = arith.constant 0 : index
    %c0_41 = arith.constant 0 : index
    %116 = vector.load %arg11[%c0_40, %c0_41] : memref<1x128xf32, #tpu.memory_space<vmem>>, vector<1x128xf32>
    %117 = vector.broadcast %116 : vector<1x128xf32> to vector<8x128xf32>
    %118 = arith.addf %115, %117 : vector<8x128xf32>
    %cst_42 = arith.constant 5.000000e-01 : f32
    %119 = vector.broadcast %cst_42 : f32 to vector<8x128xf32>
    %120 = arith.mulf %119, %118 : vector<8x128xf32>
    %cst_43 = arith.constant 4.471500e-02 : f32
    %121 = vector.broadcast %cst_43 : f32 to vector<8x128xf32>
    %122 = arith.mulf %121, %118 : vector<8x128xf32>
    %123 = arith.mulf %122, %118 : vector<8x128xf32>
    %124 = arith.mulf %123, %118 : vector<8x128xf32>
    %125 = arith.addf %118, %124 : vector<8x128xf32>
    %cst_44 = arith.constant 0.797884583 : f32
    %126 = vector.broadcast %cst_44 : f32 to vector<8x128xf32>
    %127 = arith.mulf %126, %125 : vector<8x128xf32>
    %128 = math.tanh %127 : vector<8x128xf32>
    %cst_45 = arith.constant 1.000000e+00 : f32
    %129 = vector.broadcast %cst_45 : f32 to vector<8x128xf32>
    %130 = arith.addf %129, %128 : vector<8x128xf32>
    %131 = arith.mulf %120, %130 : vector<8x128xf32>
    %132 = arith.truncf %131 : vector<8x128xf32> to vector<8x128xbf16>
    %c0_46 = arith.constant 0 : index
    %c0_47 = arith.constant 0 : index
    %133 = vector.load %arg12[%c0_46, %c0_47] : memref<128x32xbf16, #tpu.memory_space<vmem>>, vector<128x32xbf16>
    %cst_48 = arith.constant dense<0.000000e+00> : vector<8x32xf32>
    %134 = tpu.matmul %132, %133, %cst_48 {dimension_numbers = #tpu.dot_dimension_numbers<[1], [0], [0], [1], [0, 0, 1, 1], [], []>} : vector<8x128xbf16>, vector<128x32xbf16>, vector<8x32xf32> -> vector<8x32xf32>
    %c0_49 = arith.constant 0 : index
    %c0_50 = arith.constant 0 : index
    %135 = vector.load %arg13[%c0_49, %c0_50] : memref<1x32xf32, #tpu.memory_space<vmem>>, vector<1x32xf32>
    %136 = vector.broadcast %135 : vector<1x32xf32> to vector<8x32xf32>
    %137 = arith.addf %134, %136 : vector<8x32xf32>
    %138 = arith.addf %90, %137 : vector<8x32xf32>
    %c0_51 = arith.constant 0 : index
    %c0_52 = arith.constant 0 : index
    %c0_53 = arith.constant 0 : index
    %139 = vector.load %arg14[%c0_51, %c0_52, %c0_53] : memref<1x8x32xf32, #tpu.memory_space<vmem>>, vector<1x8x32xf32>
    %140 = vector.shape_cast %139 : vector<1x8x32xf32> to vector<8x32xf32>
    %141 = vector.shape_cast %138 : vector<8x32xf32> to vector<1x8x32xf32>
    tpu.vector_store %arg14[%c0_51, %c0_52, %c0_53], %141 {strides = array<i32>} : memref<1x8x32xf32, #tpu.memory_space<vmem>>, vector<1x8x32xf32>,
    return
  }
  func.func @transform_0(%arg0: i32) -> (i32, i32, i32) {
    %c0_i32 = arith.constant 0 : i32
    %c0_i32_0 = arith.constant 0 : i32
    %c0_i32_1 = arith.constant 0 : i32
    return %arg0, %c0_i32, %c0_i32_0 : i32, i32, i32
  }
  func.func @transform_1(%arg0: i32) -> (i32, i32) {
    %c0_i32 = arith.constant 0 : i32
    %c0_i32_0 = arith.constant 0 : i32
    %c0_i32_1 = arith.constant 0 : i32
    return %c0_i32, %c0_i32_0 : i32, i32
  }
  func.func @transform_2(%arg0: i32) -> (i32, i32) {
    %c0_i32 = arith.constant 0 : i32
    %c0_i32_0 = arith.constant 0 : i32
    %c0_i32_1 = arith.constant 0 : i32
    return %c0_i32, %c0_i32_0 : i32, i32
  }
  func.func @transform_3(%arg0: i32) -> (i32, i32) {
    %c0_i32 = arith.constant 0 : i32
    %c0_i32_0 = arith.constant 0 : i32
    %c0_i32_1 = arith.constant 0 : i32
    return %c0_i32, %c0_i32_0 : i32, i32
  }
  func.func @transform_4(%arg0: i32) -> (i32, i32) {
    %c0_i32 = arith.constant 0 : i32
    %c0_i32_0 = arith.constant 0 : i32
    %c0_i32_1 = arith.constant 0 : i32
    return %c0_i32, %c0_i32_0 : i32, i32
  }
  func.func @transform_5(%arg0: i32) -> (i32, i32, i32) {
    %c0_i32 = arith.constant 0 : i32
    %c0_i32_0 = arith.constant 0 : i32
    %c0_i32_1 = arith.constant 0 : i32
    %c0_i32_2 = arith.constant 0 : i32
    return %c0_i32, %c0_i32_0, %c0_i32_1 : i32, i32, i32
  }
  func.func @transform_6(%arg0: i32) -> (i32, i32) {
    %c0_i32 = arith.constant 0 : i32
    %c0_i32_0 = arith.constant 0 : i32
    %c0_i32_1 = arith.constant 0 : i32
    return %c0_i32, %c0_i32_0 : i32, i32
  }
  func.func @transform_7(%arg0: i32) -> (i32, i32) {
    %c0_i32 = arith.constant 0 : i32
    %c0_i32_0 = arith.constant 0 : i32
    %c0_i32_1 = arith.constant 0 : i32
    return %c0_i32, %c0_i32_0 : i32, i32
  }
  func.func @transform_8(%arg0: i32) -> (i32, i32) {
    %c0_i32 = arith.constant 0 : i32
    %c0_i32_0 = arith.constant 0 : i32
    %c0_i32_1 = arith.constant 0 : i32
    return %c0_i32, %c0_i32_0 : i32, i32
  }
  func.func @transform_9(%arg0: i32) -> (i32, i32) {
    %c0_i32 = arith.constant 0 : i32
    %c0_i32_0 = arith.constant 0 : i32
    %c0_i32_1 = arith.constant 0 : i32
    return %c0_i32, %c0_i32_0 : i32, i32
  }
  func.func @transform_10(%arg0: i32) -> (i32, i32) {
    %c0_i32 = arith.constant 0 : i32
    %c0_i32_0 = arith.constant 0 : i32
    %c0_i32_1 = arith.constant 0 : i32
    return %c0_i32, %c0_i32_0 : i32, i32
  }
  func.func @transform_11(%arg0: i32) -> (i32, i32) {
    %c0_i32 = arith.constant 0 : i32
    %c0_i32_0 = arith.constant 0 : i32
    %c0_i32_1 = arith.constant 0 : i32
    return %c0_i32, %c0_i32_0 : i32, i32
  }
  func.func @transform_12(%arg0: i32) -> (i32, i32) {
    %c0_i32 = arith.constant 0 : i32
    %c0_i32_0 = arith.constant 0 : i32
    %c0_i32_1 = arith.constant 0 : i32
    return %c0_i32, %c0_i32_0 : i32, i32
  }
  func.func @transform_13(%arg0: i32) -> (i32, i32, i32) {
    %c0_i32 = arith.constant 0 : i32
    %c0_i32_0 = arith.constant 0 : i32
    %c0_i32_1 = arith.constant 0 : i32
    return %arg0, %c0_i32, %c0_i32_0 : i32, i32, i32
  }
}

</mosaic_0001>

<llo_original>
// kernel: _lambda_.5
$region0: #{_lambda_.5}
  #allocation0 [shape = 'u32[]', space=smem, size = 0x4, offset = 0x4, fixed_abs, tag = 'smem constant byte address 0x4 - core index']
  #allocation1 [shape = 'u32[72,128]{1,0:T(1,128)}', space=vmem, size = 0x9000, scoped, tag = 'internal scratch']
  %s0 = inlined_call_operand.vmem [shape: f32[2,32], index: 0, kind: input, shape index: {}]
  %s1 = inlined_call_operand.vmem [shape: f32[1,32], index: 1, kind: input, shape index: {}]
  %s2 = inlined_call_operand.vmem [shape: f32[1,32], index: 2, kind: input, shape index: {}]
  %s3 = inlined_call_operand.vmem [shape: bf16[32,128], index: 3, kind: input, shape index: {}]
  %s4 = inlined_call_operand.hbm [shape: f32[2,128], index: 4, kind: output, shape index: {}]
  %s5 = sld [smem:[#allocation0]]
  $region26: #{_lambda_.5} parent=0
    _
  %s7 = ssub.s32 1, %s5
  %s8 = scalar_select 0, %s7, %s5
  $region1: #{_lambda_.5} parent=0
    #allocation2 [shape = 'u8[1024]{0}', space=vmem, size = 0x400, scoped, tag = 'output window, operand 0, single buffered']
    #allocation3 [shape = 's32[1]{0}', space=sflag, size = 0x4, scoped, tag = 'scoped memory for _lambda_.5']
    %9 = vsyncpa [#allocation3], 0
    // Predicated region
    $region2: #{_lambda_.5} parent=1 // pred_check
      _
    $region3: #{_lambda_.5} parent=1 // pred_check_branch
      %11 = sbr.rel (0) target = $region5
    $region4: #{_lambda_.5} parent=1 // pred_region
      _
    $region5: #{_lambda_.5} parent=1 // pred_fallthru
      _
    // Predicated region
    $region6: #{_lambda_.5} parent=1 // pred_check
      _
    $region7: #{_lambda_.5} parent=1 // pred_check_branch
      %13 = sbr.rel (0) target = $region9
    $region8: #{_lambda_.5} parent=1 // pred_region
      _
    $region9: #{_lambda_.5} parent=1 // pred_fallthru
      _
    // Predicated region
    $region10: #{_lambda_.5} parent=1 // pred_check
      _
    $region11: #{_lambda_.5} parent=1 // pred_check_branch
      %15 = sbr.rel (0) target = $region13
    $region12: #{_lambda_.5} parent=1 // pred_region
      _
    $region13: #{_lambda_.5} parent=1 // pred_fallthru
      _
    // Predicated region
    $region14: #{_lambda_.5} parent=1 // pred_check
      _
    $region15: #{_lambda_.5} parent=1 // pred_check_branch
      %17 = sbr.rel (0) target = $region17
    $region16: #{_lambda_.5} parent=1 // pred_region
      _
    $region17: #{_lambda_.5} parent=1 // pred_fallthru
      _
    %v19 = vld [vmem:[%s0] sm:$0x3]
    %v20 = vld [vmem:[%s1] sm:$0x1]
    %v21 = vld [vmem:[%s2] sm:$0x1]
    %vm22 = vcmask 254976
    %v23 = vsel %vm22, %v19, 0.0
    %24 = vadd.xlane.f32.xlu0 %v23
    %v25 = vpop.xlane.xlu0 %24
    %v26 = vrcp.pop 32.0
    %v27 = vmul.f32 32.0, %v26
    %v28 = vsub.f32 1.0, %v27
    %v29 = vmul.f32 %v26, %v28
    %v30 = vadd.f32 %v26, %v29
    %vm31 = vweird.f32 %v26
    %v32 = vsel %vm31, %v26, %v30
    %v33 = vmul.f32 %v25, %v32
    %v34 = vsub.f32 %v19, %v33
    %v35 = vmul.f32 %v34, %v34
    %v36 = vsel %vm22, %v35, 0.0
    %37 = vadd.xlane.f32.xlu0 %v36
    %v38 = vpop.xlane.xlu0 %37
    %v39 = vmul.f32 %v38, %v32
    %v40 = vadd.f32 %v39, 1e-05
    %v41 = vrsqrt.pop %v40
    %v42 = vmul.f32 %v41, %v40
    %v43 = vmul.f32 %v42, %v41
    %v44 = vmul.f32 0.5, %v43
    %v45 = vsub.f32 1.5, %v44
    %v46 = vmul.f32 %v41, %v45
    %vm47 = vweird.f32 %v40
    %vm48 = vweird.f32 %v41
    %vm49 = vmor %vm47, %vm48
    %v50 = vsel %vm49, %v41, %v46
    %v51 = vmul.f32 %v34, %v50
    %v53 = vperm.slane %v20, 0
    %v55 = vmul.f32 %v51, %v53
    %v57 = vperm.slane %v21, 0
    %v59 = vadd.f32 %v55, %v57
    %v60 = vpack.c.bf16 %v59, %v59
    %v61 = vld [vmem:[%s3] sm:$0xf]
    %v62 = vld [vmem:[%s3 + $0x4] sm:$0xf]
    %v63 = vld [vmem:[%s3 + $0x8] sm:$0xf]
    %v64 = vld [vmem:[%s3 + $0xc] sm:$0xf]
    %v69 = vunpack.c.l.b16 %v61
    %v70 = vunpack.c.l.b16 %v62
    %v71 = vunpack.c.l.b16 %v63
    %v72 = vunpack.c.l.b16 %v64
    %v73 = vpack.c.b16 %v70, %v69
    %v74 = vpack.c.b16 %v72, %v71
    %vm77 = vcmask 261120
    %v79 = vsel %vm77, %v60, 0
    %81 = vmatpush.bf16.msra.mxu0 0
    %82 = vmatpush.bf16.msra.mxu0 0
    %83 = vmatpush.bf16.msra.mxu0 0
    %84 = vmatpush.bf16.msra.mxu0 0
    %85 = vmatpush.bf16.msra.mxu0 0
    %86 = vmatpush.bf16.msra.mxu0 0
    %87 = vmatpush.bf16.msra.mxu0 %v74
    %88 = vmatpush.bf16.msra.mxu0 %v73
    %89 = vmatmul.bf16.gmra.mxu0 %v79
    %v90 = vpop.f32.mrf.mxu0
    %v91 = vadd.f32 0.0, %v90
    %v92 = vpop.f32.mrf.mxu0
    %93 = vdwg.mxu0
    %94 = vst [vmem:[#allocation2] sm:$0x3] %v91
    // Predicated region
    $region18: #{_lambda_.5} parent=1 // pred_check
      _
    $region19: #{_lambda_.5} parent=1 // pred_check_branch
      %96 = sbr.rel (0) target = $region21
    $region20: #{_lambda_.5} parent=1 // pred_region
      %98 = vsyncadd [#allocation3], 0
      %s100 = sshll.u32 [#allocation2], 4
      %s101 = int_to_ptr.vmem [resolvable:$true] %s100
      %s102 = sshll.u32 %s4, 4
      %s103 = int_to_ptr.hbm [resolvable:$true] %s102
      %105 = dma.vmem_to_hbm [thread:$0]  %s101, 32, %s103, [#allocation3]
    $region21: #{_lambda_.5} parent=1 // pred_fallthru
      _
    // Predicated region
    $region22: #{_lambda_.5} parent=1 // pred_check
      _
    $region23: #{_lambda_.5} parent=1 // pred_check_branch
      %107 = sbr.rel (0) target = $region25
    $region24: #{_lambda_.5} parent=1 // pred_region
      %109 = dma.done [#allocation3], 32
    $region25: #{_lambda_.5} parent=1 // pred_fallthru
      _
    %110 = vsyncpa [#allocation3], 1

// kernel: _lambda_.3
$region0: #{_lambda_.3}
  #allocation0 [shape = 'u32[]', space=smem, size = 0x4, offset = 0x4, fixed_abs, tag = 'smem constant byte address 0x4 - core index']
  #allocation1 [shape = 'u32[72,128]{1,0:T(1,128)}', space=vmem, size = 0x9000, scoped, tag = 'internal scratch']
  %s0 = inlined_call_operand.vmem [shape: f32[2,8,32], index: 0, kind: input, shape index: {}]
  %s1 = inlined_call_operand.vmem [shape: f32[1,32], index: 1, kind: input, shape index: {}]
  %s2 = inlined_call_operand.vmem [shape: f32[1,32], index: 2, kind: input, shape index: {}]
  %s3 = inlined_call_operand.vmem [shape: bf16[32,96], index: 3, kind: input, shape index: {}]
  %s4 = inlined_call_operand.vmem [shape: f32[1,96], index: 4, kind: input, shape index: {}]
  %s5 = inlined_call_operand.vmem [shape: bf16[4,8,32], index: 5, kind: input, shape index: {}]
  %s6 = inlined_call_operand.vmem [shape: f32[1,32], index: 6, kind: input, shape index: {}]
  %s7 = inlined_call_operand.vmem [shape: f32[1,32], index: 7, kind: input, shape index: {}]
  %s8 = inlined_call_operand.vmem [shape: f32[1,32], index: 8, kind: input, shape index: {}]
  %s9 = inlined_call_operand.vmem [shape: bf16[32,128], index: 9, kind: input, shape index: {}]
  %s10 = inlined_call_operand.vmem [shape: f32[1,128], index: 10, kind: input, shape index: {}]
  %s11 = inlined_call_operand.vmem [shape: bf16[128,32], index: 11, kind: input, shape index: {}]
  %s12 = inlined_call_operand.vmem [shape: f32[1,32], index: 12, kind: input, shape index: {}]
  %s13 = inlined_call_operand.vmem [shape: f32[2,8,32], index: 13, kind: output, shape index: {}]
  %s14 = sld [smem:[#allocation0]]
  $region85: #{_lambda_.3} parent=0
    _
  %s16 = ssub.s32 1, %s14
  %s17 = scalar_select 0, %s16, %s14
  loop: start=0, step=1, limit=4
  $region2: #{_lambda_.3} parent=0 // loop_pre_header
    _
  $region3: #{_lambda_.3} parent=0 // loop_header
    %s19 = sphi 0, %s23
    %p20 = scmp.ge.s32.totalorder %s19, 4
    %s29 = sphi 0, %s31
    %s32 = sphi 0, %s29
    %s33 = sphi 0, %s32
    %s49 = sphi 0, %s33
    %s53 = sphi 0, %s53
    %s55 = sphi 0, %s53
    %s56 = sphi 0, %s55
    %s70 = sphi 0, %s56
    %s74 = sphi 0, %s74
    %s76 = sphi 0, %s74
    %s77 = sphi 0, %s76
    %s91 = sphi 0, %s77
    %s95 = sphi 0, %s95
    %s97 = sphi 0, %s95
    %s98 = sphi 0, %s97
    %s112 = sphi 0, %s98
    %s116 = sphi 0, %s116
    %s118 = sphi 0, %s116
    %s119 = sphi 0, %s118
    %s133 = sphi 0, %s119
    %s137 = sphi 0, %s137
    %s139 = sphi 0, %s137
    %s140 = sphi 0, %s139
    %s154 = sphi 0, %s140
    %s158 = sphi 0, %s158
    %s160 = sphi 0, %s158
    %s161 = sphi 0, %s160
    %s175 = sphi 0, %s161
    %s179 = sphi 0, %s179
    %s181 = sphi 0, %s179
    %s182 = sphi 0, %s181
    %s196 = sphi 0, %s182
    %s200 = sphi 0, %s200
    %s202 = sphi 0, %s200
    %s203 = sphi 0, %s202
    %s217 = sphi 0, %s203
    %s221 = sphi 0, %s221
    %s223 = sphi 0, %s221
    %s224 = sphi 0, %s223
    %s238 = sphi 0, %s224
    %s242 = sphi 0, %s242
    %s244 = sphi 0, %s242
    %s245 = sphi 0, %s244
    %s259 = sphi 0, %s245
    %s263 = sphi 0, %s263
    %s265 = sphi 0, %s263
    %s266 = sphi 0, %s265
    %s280 = sphi 0, %s266
    %s284 = sphi 0, %s284
    %s286 = sphi 0, %s284
    %s287 = sphi 0, %s286
    %s301 = sphi 0, %s287
    %s307 = sphi 0, %s309
    %s310 = sphi 0, %s307
    %s311 = sphi 0, %s310
    %s327 = sphi 0, %s311
  $region4: #{_lambda_.3} parent=0 // loop_header_branch
    %22 = sbr.rel (%p20) target = $region8
  $region5: #{_lambda_.3} parent=0 // loop_body
    %s24 = ssub.s32 %s19, 1
    %s25 = ssub.s32 %s19, 2
    %s26 = sadd.s32 %s19, 1
    %s27 = ssub.s32 %s19, %s26
    %p28 = scmp.eq.s32.totalorder %s27, 0
    %s30 = sadd.s32 %s29, 1
    %s31 = scalar_select %p28, %s29, %s30
    %p34 = pneg %p28
    %p35 = scmp.eq.s32.totalorder %s19, 1
    %p36 = por %p34, %p35
    %p37 = scmp.ne.s32.totalorder %s29, %s32
    %p38 = scmp.eq.s32.totalorder %s19, 0
    %p39 = por %p37, %p38
    %p40 = scmp.ne.s32.totalorder %s29, %s32
    %p41 = scmp.eq.s32.totalorder %s24, 1
    %p42 = por %p40, %p41
    %p43 = scmp.ne.s32.totalorder %s32, %s33
    %p44 = scmp.eq.s32.totalorder %s24, 0
    %p45 = por %p43, %p44
    %p46 = scmp.ne.s32.totalorder %s32, %s33
    %p47 = scmp.eq.s32.totalorder %s25, 1
    %p48 = por %p46, %p47
    %p50 = scmp.ne.s32.totalorder %s33, %s49
    %p51 = scmp.eq.s32.totalorder %s25, 0
    %p52 = por %p50, %p51
    %s54 = sadd.s32 %s53, 1
    %p57 = scmp.eq.s32.totalorder %s19, 1
    %p58 = scmp.ne.s32.totalorder %s53, %s55
    %p59 = scmp.eq.s32.totalorder %s19, 0
    %p60 = por %p58, %p59
    %p61 = scmp.ne.s32.totalorder %s53, %s55
    %p62 = scmp.eq.s32.totalorder %s24, 1
    %p63 = por %p61, %p62
    %p64 = scmp.ne.s32.totalorder %s55, %s56
    %p65 = scmp.eq.s32.totalorder %s24, 0
    %p66 = por %p64, %p65
    %p67 = scmp.ne.s32.totalorder %s55, %s56
    %p68 = scmp.eq.s32.totalorder %s25, 1
    %p69 = por %p67, %p68
    %p71 = scmp.ne.s32.totalorder %s56, %s70
    %p72 = scmp.eq.s32.totalorder %s25, 0
    %p73 = por %p71, %p72
    %s75 = sadd.s32 %s74, 1
    %p78 = scmp.eq.s32.totalorder %s19, 1
    %p79 = scmp.ne.s32.totalorder %s74, %s76
    %p80 = scmp.eq.s32.totalorder %s19, 0
    %p81 = por %p79, %p80
    %p82 = scmp.ne.s32.totalorder %s74, %s76
    %p83 = scmp.eq.s32.totalorder %s24, 1
    %p84 = por %p82, %p83
    %p85 = scmp.ne.s32.totalorder %s76, %s77
    %p86 = scmp.eq.s32.totalorder %s24, 0
    %p87 = por %p85, %p86
    %p88 = scmp.ne.s32.totalorder %s76, %s77
    %p89 = scmp.eq.s32.totalorder %s25, 1
    %p90 = por %p88, %p89
    %p92 = scmp.ne.s32.totalorder %s77, %s91
    %p93 = scmp.eq.s32.totalorder %s25, 0
    %p94 = por %p92, %p93
    %s96 = sadd.s32 %s95, 1
    %p99 = scmp.eq.s32.totalorder %s19, 1
    %p100 = scmp.ne.s32.totalorder %s95, %s97
    %p101 = scmp.eq.s32.totalorder %s19, 0
    %p102 = por %p100, %p101
    %p103 = scmp.ne.s32.totalorder %s95, %s97
    %p104 = scmp.eq.s32.totalorder %s24, 1
    %p105 = por %p103, %p104
    %p106 = scmp.ne.s32.totalorder %s97, %s98
    %p107 = scmp.eq.s32.totalorder %s24, 0
    %p108 = por %p106, %p107
    %p109 = scmp.ne.s32.totalorder %s97, %s98
    %p110 = scmp.eq.s32.totalorder %s25, 1
    %p111 = por %p109, %p110
    %p113 = scmp.ne.s32.totalorder %s98, %s112
    %p114 = scmp.eq.s32.totalorder %s25, 0
    %p115 = por %p113, %p114
    %s117 = sadd.s32 %s116, 1
    %p120 = scmp.eq.s32.totalorder %s19, 1
    %p121 = scmp.ne.s32.totalorder %s116, %s118
    %p122 = scmp.eq.s32.totalorder %s19, 0
    %p123 = por %p121, %p122
    %p124 = scmp.ne.s32.totalorder %s116, %s118
    %p125 = scmp.eq.s32.totalorder %s24, 1
    %p126 = por %p124, %p125
    %p127 = scmp.ne.s32.totalorder %s118, %s119
    %p128 = scmp.eq.s32.totalorder %s24, 0
    %p129 = por %p127, %p128
    %p130 = scmp.ne.s32.totalorder %s118, %s119
    %p131 = scmp.eq.s32.totalorder %s25, 1
    %p132 = por %p130, %p131
    %p134 = scmp.ne.s32.totalorder %s119, %s133
    %p135 = scmp.eq.s32.totalorder %s25, 0
    %p136 = por %p134, %p135
    %s138 = sadd.s32 %s137, 1
    %p141 = scmp.eq.s32.totalorder %s19, 1
    %p142 = scmp.ne.s32.totalorder %s137, %s139
    %p143 = scmp.eq.s32.totalorder %s19, 0
    %p144 = por %p142, %p143
    %p145 = scmp.ne.s32.totalorder %s137, %s139
    %p146 = scmp.eq.s32.totalorder %s24, 1
    %p147 = por %p145, %p146
    %p148 = scmp.ne.s32.totalorder %s139, %s140
    %p149 = scmp.eq.s32.totalorder %s24, 0
    %p150 = por %p148, %p149
    %p151 = scmp.ne.s32.totalorder %s139, %s140
    %p152 = scmp.eq.s32.totalorder %s25, 1
    %p153 = por %p151, %p152
    %p155 = scmp.ne.s32.totalorder %s140, %s154
    %p156 = scmp.eq.s32.totalorder %s25, 0
    %p157 = por %p155, %p156
    %s159 = sadd.s32 %s158, 1
    %p162 = scmp.eq.s32.totalorder %s19, 1
    %p163 = scmp.ne.s32.totalorder %s158, %s160
    %p164 = scmp.eq.s32.totalorder %s19, 0
    %p165 = por %p163, %p164
    %p166 = scmp.ne.s32.totalorder %s158, %s160
    %p167 = scmp.eq.s32.totalorder %s24, 1
    %p168 = por %p166, %p167
    %p169 = scmp.ne.s32.totalorder %s160, %s161
    %p170 = scmp.eq.s32.totalorder %s24, 0
    %p171 = por %p169, %p170
    %p172 = scmp.ne.s32.totalorder %s160, %s161
    %p173 = scmp.eq.s32.totalorder %s25, 1
    %p174 = por %p172, %p173
    %p176 = scmp.ne.s32.totalorder %s161, %s175
    %p177 = scmp.eq.s32.totalorder %s25, 0
    %p178 = por %p176, %p177
    %s180 = sadd.s32 %s179, 1
    %p183 = scmp.eq.s32.totalorder %s19, 1
    %p184 = scmp.ne.s32.totalorder %s179, %s181
    %p185 = scmp.eq.s32.totalorder %s19, 0
    %p186 = por %p184, %p185
    %p187 = scmp.ne.s32.totalorder %s179, %s181
    %p188 = scmp.eq.s32.totalorder %s24, 1
    %p189 = por %p187, %p188
    %p190 = scmp.ne.s32.totalorder %s181, %s182
    %p191 = scmp.eq.s32.totalorder %s24, 0
    %p192 = por %p190, %p191
    %p193 = scmp.ne.s32.totalorder %s181, %s182
    %p194 = scmp.eq.s32.totalorder %s25, 1
    %p195 = por %p193, %p194
    %p197 = scmp.ne.s32.totalorder %s182, %s196
    %p198 = scmp.eq.s32.totalorder %s25, 0
    %p199 = por %p197, %p198
    %s201 = sadd.s32 %s200, 1
    %p204 = scmp.eq.s32.totalorder %s19, 1
    %p205 = scmp.ne.s32.totalorder %s200, %s202
    %p206 = scmp.eq.s32.totalorder %s19, 0
    %p207 = por %p205, %p206
    %p208 = scmp.ne.s32.totalorder %s200, %s202
    %p209 = scmp.eq.s32.totalorder %s24, 1
    %p210 = por %p208, %p209
    %p211 = scmp.ne.s32.totalorder %s202, %s203
    %p212 = scmp.eq.s32.totalorder %s24, 0
    %p213 = por %p211, %p212
    %p214 = scmp.ne.s32.totalorder %s202, %s203
    %p215 = scmp.eq.s32.totalorder %s25, 1
    %p216 = por %p214, %p215
    %p218 = scmp.ne.s32.totalorder %s203, %s217
    %p219 = scmp.eq.s32.totalorder %s25, 0
    %p220 = por %p218, %p219
    %s222 = sadd.s32 %s221, 1
    %p225 = scmp.eq.s32.totalorder %s19, 1
    %p226 = scmp.ne.s32.totalorder %s221, %s223
    %p227 = scmp.eq.s32.totalorder %s19, 0
    %p228 = por %p226, %p227
    %p229 = scmp.ne.s32.totalorder %s221, %s223
    %p230 = scmp.eq.s32.totalorder %s24, 1
    %p231 = por %p229, %p230
    %p232 = scmp.ne.s32.totalorder %s223, %s224
    %p233 = scmp.eq.s32.totalorder %s24, 0
    %p234 = por %p232, %p233
    %p235 = scmp.ne.s32.totalorder %s223, %s224
    %p236 = scmp.eq.s32.totalorder %s25, 1
    %p237 = por %p235, %p236
    %p239 = scmp.ne.s32.totalorder %s224, %s238
    %p240 = scmp.eq.s32.totalorder %s25, 0
    %p241 = por %p239, %p240
    %s243 = sadd.s32 %s242, 1
    %p246 = scmp.eq.s32.totalorder %s19, 1
    %p247 = scmp.ne.s32.totalorder %s242, %s244
    %p248 = scmp.eq.s32.totalorder %s19, 0
    %p249 = por %p247, %p248
    %p250 = scmp.ne.s32.totalorder %s242, %s244
    %p251 = scmp.eq.s32.totalorder %s24, 1
    %p252 = por %p250, %p251
    %p253 = scmp.ne.s32.totalorder %s244, %s245
    %p254 = scmp.eq.s32.totalorder %s24, 0
    %p255 = por %p253, %p254
    %p256 = scmp.ne.s32.totalorder %s244, %s245
    %p257 = scmp.eq.s32.totalorder %s25, 1
    %p258 = por %p256, %p257
    %p260 = scmp.ne.s32.totalorder %s245, %s259
    %p261 = scmp.eq.s32.totalorder %s25, 0
    %p262 = por %p260, %p261
    %s264 = sadd.s32 %s263, 1
    %p267 = scmp.eq.s32.totalorder %s19, 1
    %p268 = scmp.ne.s32.totalorder %s263, %s265
    %p269 = scmp.eq.s32.totalorder %s19, 0
    %p270 = por %p268, %p269
    %p271 = scmp.ne.s32.totalorder %s263, %s265
    %p272 = scmp.eq.s32.totalorder %s24, 1
    %p273 = por %p271, %p272
    %p274 = scmp.ne.s32.totalorder %s265, %s266
    %p275 = scmp.eq.s32.totalorder %s24, 0
    %p276 = por %p274, %p275
    %p277 = scmp.ne.s32.totalorder %s265, %s266
    %p278 = scmp.eq.s32.totalorder %s25, 1
    %p279 = por %p277, %p278
    %p281 = scmp.ne.s32.totalorder %s266, %s280
    %p282 = scmp.eq.s32.totalorder %s25, 0
    %p283 = por %p281, %p282
    %s285 = sadd.s32 %s284, 1
    %p288 = scmp.eq.s32.totalorder %s19, 1
    %p289 = scmp.ne.s32.totalorder %s284, %s286
    %p290 = scmp.eq.s32.totalorder %s19, 0
    %p291 = por %p289, %p290
    %p292 = scmp.ne.s32.totalorder %s284, %s286
    %p293 = scmp.eq.s32.totalorder %s24, 1
    %p294 = por %p292, %p293
    %p295 = scmp.ne.s32.totalorder %s286, %s287
    %p296 = scmp.eq.s32.totalorder %s24, 0
    %p297 = por %p295, %p296
    %p298 = scmp.ne.s32.totalorder %s286, %s287
    %p299 = scmp.eq.s32.totalorder %s25, 1
    %p300 = por %p298, %p299
    %p302 = scmp.ne.s32.totalorder %s287, %s301
    %p303 = scmp.eq.s32.totalorder %s25, 0
    %p304 = por %p302, %p303
    %s305 = ssub.s32 %s19, %s26
    %p306 = scmp.eq.s32.totalorder %s305, 0
    %s308 = sadd.s32 %s307, 1
    %s309 = scalar_select %p306, %s307, %s308
    %p312 = pneg %p306
    %p313 = scmp.eq.s32.totalorder %s19, 1
    %p314 = por %p312, %p313
    %p315 = scmp.ne.s32.totalorder %s307, %s310
    %p316 = scmp.eq.s32.totalorder %s19, 0
    %p317 = por %p315, %p316
    %p318 = scmp.ne.s32.totalorder %s307, %s310
    %p319 = scmp.eq.s32.totalorder %s24, 1
    %p320 = por %p318, %p319
    %p321 = scmp.ne.s32.totalorder %s310, %s311
    %p322 = scmp.eq.s32.totalorder %s24, 0
    %p323 = por %p321, %p322
    %p324 = scmp.ne.s32.totalorder %s310, %s311
    %p325 = scmp.eq.s32.totalorder %s25, 1
    %p326 = por %p324, %p325
    %p328 = scmp.ne.s32.totalorder %s311, %s327
    %p329 = scmp.eq.s32.totalorder %s25, 0
    %p330 = por %p328, %p329
    %p331 = scmp.le.s32.totalorder 1, %s19
    %p332 = scmp.lt.s32.totalorder %s19, 3
    %p333 = pnand %p331, %p332
    %p334 = pneg %p333
    // Predicated region
    $region9: #{_lambda_.3} parent=5 // pred_check
      _
    $region10: #{_lambda_.3} parent=5 // pred_check_branch
      %336 = sbr.rel (%p333) target = $region12
    $region11: #{_lambda_.3} parent=5 // pred_region
      %s337 = ssub.s32 %s19, 1
      // Predicated region
      $region13: #{_lambda_.3} parent=11 // pred_check
        %p338 = pneg %p66
      $region14: #{_lambda_.3} parent=11 // pred_check_branch
        %340 = sbr.rel (%p338) target = $region16
      $region15: #{_lambda_.3} parent=11 // pred_region
        _
      $region16: #{_lambda_.3} parent=11 // pred_fallthru
        _
      // Predicated region
      $region17: #{_lambda_.3} parent=11 // pred_check
        %p341 = pneg %p87
      $region18: #{_lambda_.3} parent=11 // pred_check_branch
        %343 = sbr.rel (%p341) target = $region20
      $region19: #{_lambda_.3} parent=11 // pred_region
        _
      $region20: #{_lambda_.3} parent=11 // pred_fallthru
        _
      // Predicated region
      $region21: #{_lambda_.3} parent=11 // pred_check
        %p344 = pneg %p108
      $region22: #{_lambda_.3} parent=11 // pred_check_branch
        %346 = sbr.rel (%p344) target = $region24
      $region23: #{_lambda_.3} parent=11 // pred_region
        _
      $region24: #{_lambda_.3} parent=11 // pred_fallthru
        _
      // Predicated region
      $region25: #{_lambda_.3} parent=11 // pred_check
        %p347 = pneg %p129
      $region26: #{_lambda_.3} parent=11 // pred_check_branch
        %349 = sbr.rel (%p347) target = $region28
      $region27: #{_lambda_.3} parent=11 // pred_region
        _
      $region28: #{_lambda_.3} parent=11 // pred_fallthru
        _
      // Predicated region
      $region29: #{_lambda_.3} parent=11 // pred_check
        %p350 = pneg %p150
      $region30: #{_lambda_.3} parent=11 // pred_check_branch
        %352 = sbr.rel (%p350) target = $region32
      $region31: #{_lambda_.3} parent=11 // pred_region
        _
      $region32: #{_lambda_.3} parent=11 // pred_fallthru
        _
      // Predicated region
      $region33: #{_lambda_.3} parent=11 // pred_check
        %p353 = pneg %p171
      $region34: #{_lambda_.3} parent=11 // pred_check_branch
        %355 = sbr.rel (%p353) target = $region36
      $region35: #{_lambda_.3} parent=11 // pred_region
        _
      $region36: #{_lambda_.3} parent=11 // pred_fallthru
        _
      // Predicated region
      $region37: #{_lambda_.3} parent=11 // pred_check
        %p356 = pneg %p192
      $region38: #{_lambda_.3} parent=11 // pred_check_branch
        %358 = sbr.rel (%p356) target = $region40
      $region39: #{_lambda_.3} parent=11 // pred_region
        _
      $region40: #{_lambda_.3} parent=11 // pred_fallthru
        _
      // Predicated region
      $region41: #{_lambda_.3} parent=11 // pred_check
        %p359 = pneg %p213
      $region42: #{_lambda_.3} parent=11 // pred_check_branch
        %361 = sbr.rel (%p359) target = $region44
      $region43: #{_lambda_.3} parent=11 // pred_region
        _
      $region44: #{_lambda_.3} parent=11 // pred_fallthru
        _
      // Predicated region
      $region45: #{_lambda_.3} parent=11 // pred_check
        %p362 = pneg %p234
      $region46: #{_lambda_.3} parent=11 // pred_check_branch
        %364 = sbr.rel (%p362) target = $region48
      $region47: #{_lambda_.3} parent=11 // pred_region
        _
      $region48: #{_lambda_.3} parent=11 // pred_fallthru
        _
      // Predicated region
      $region49: #{_lambda_.3} parent=11 // pred_check
        %p365 = pneg %p255
      $region50: #{_lambda_.3} parent=11 // pred_check_branch
        %367 = sbr.rel (%p365) target = $region52
      $region51: #{_lambda_.3} parent=11 // pred_region
        _
      $region52: #{_lambda_.3} parent=11 // pred_fallthru
        _
      // Predicated region
      $region53: #{_lambda_.3} parent=11 // pred_check
        %p368 = pneg %p276
      $region54: #{_lambda_.3} parent=11 // pred_check_branch
        %370 = sbr.rel (%p368) target = $region56
      $region55: #{_lambda_.3} parent=11 // pred_region
        _
      $region56: #{_lambda_.3} parent=11 // pred_fallthru
        _
      // Predicated region
      $region57: #{_lambda_.3} parent=11 // pred_check
        %p371 = pneg %p297
      $region58: #{_lambda_.3} parent=11 // pred_check_branch
        %373 = sbr.rel (%p371) target = $region60
      $region59: #{_lambda_.3} parent=11 // pred_region
        _
      $region60: #{_lambda_.3} parent=11 // pred_fallthru
        _
    $region12: #{_lambda_.3} parent=5 // pred_fallthru
      _
    %p374 = scmp.lt.s32.totalorder %s19, 2
    // Predicated region
    $region61: #{_lambda_.3} parent=5 // pred_check
      %p375 = pneg %p374
    $region62: #{_lambda_.3} parent=5 // pred_check_branch
      %377 = sbr.rel (%p375) target = $region64
    $region63: #{_lambda_.3} parent=5 // pred_region
      // Predicated region
      $region65: #{_lambda_.3} parent=63 // pred_check
        %p378 = pneg %p39
      $region66: #{_lambda_.3} parent=63 // pred_check_branch
        %380 = sbr.rel (%p378) target = $region68
      $region67: #{_lambda_.3} parent=63 // pred_region
        %p381 = scmp.lt.s32.totalorder %s19, 1
        %s382 = scalar_select %p381, %s19, 1
        %s383 = smul.addr %s382, 8
        %s384 = scalar_lea.vmem %s0, %s383
      $region68: #{_lambda_.3} parent=63 // pred_fallthru
        _
    $region64: #{_lambda_.3} parent=5 // pred_fallthru
      _
    %p385 = scmp.le.s32.totalorder 1, %s19
    %p386 = scmp.lt.s32.totalorder %s19, 3
    %p387 = pnand %p385, %p386
    %p388 = pneg %p387
    // Predicated region
    $region69: #{_lambda_.3} parent=5 // pred_check
      _
    $region70: #{_lambda_.3} parent=5 // pred_check_branch
      %390 = sbr.rel (%p387) target = $region72
    $region71: #{_lambda_.3} parent=5 // pred_region
      %s391 = ssub.s32 %s19, 1
      %p392 = scmp.lt.s32.totalorder %s24, 1
      %s393 = scalar_select %p392, %s24, 1
      %s394 = smul.addr %s393, 8
      %s395 = scalar_lea.vmem %s0, %s394
      %p396 = pneg %p45
      %p397 = pneg %p42
      %p398 = pneg %p66
      %p399 = pneg %p63
      %p400 = pneg %p87
      %p401 = pneg %p84
      %p402 = pneg %p108
      %p403 = pneg %p105
      %p404 = pneg %p129
      %p405 = pneg %p126
      %p406 = pneg %p150
      %p407 = pneg %p147
      %p408 = pneg %p171
      %p409 = pneg %p168
      %p410 = pneg %p192
      %p411 = pneg %p189
      %p412 = pneg %p213
      %p413 = pneg %p210
      %p414 = pneg %p234
      %p415 = pneg %p231
      %p416 = pneg %p255
      %p417 = pneg %p252
      %p418 = pneg %p276
      %p419 = pneg %p273
      %p420 = pneg %p297
      %p421 = pneg %p294
      %p422 = pneg %p323
      %p423 = pneg %p320
      %p424 = scmp.lt.s32.totalorder %s24, 1
      %s425 = scalar_select %p424, %s24, 1
      %s426 = smul.addr %s425, 8
      %s427 = scalar_lea.vmem %s13, %s426
      %p428 = scmp.lt.s32.totalorder %s24, 1
      %s429 = scalar_select %p428, %s24, 1
      %s430 = smul.addr %s429, 8
      %s431 = scalar_lea.vmem %s0, %s430
      %p432 = scmp.lt.s32.totalorder %s24, 1
      %s433 = scalar_select %p432, %s24, 1
      %s434 = smul.addr %s433, 8
      %s435 = scalar_lea.vmem %s13, %s434
      %v437 = vld [vmem:[%s431] sm:$0xff]
      %v438 = vld [vmem:[%s1] sm:$0x1]
      %v439 = vld [vmem:[%s2] sm:$0x1]
      %vm440 = vcmask 261120
      %v441 = vsel %vm440, %v437, 0.0
      %442 = vadd.xlane.f32.xlu0 %v441
      %v443 = vpop.xlane.xlu0 %442
      %v444 = vrcp.pop 32.0
      %v445 = vmul.f32 32.0, %v444
      %v446 = vsub.f32 1.0, %v445
      %v447 = vmul.f32 %v444, %v446
      %v448 = vadd.f32 %v444, %v447
      %vm449 = vweird.f32 %v444
      %v450 = vsel %vm449, %v444, %v448
      %v451 = vmul.f32 %v443, %v450
      %v452 = vsub.f32 %v437, %v451
      %v453 = vmul.f32 %v452, %v452
      %v454 = vsel %vm440, %v453, 0.0
      %455 = vadd.xlane.f32.xlu0 %v454
      %v456 = vpop.xlane.xlu0 %455
      %v457 = vmul.f32 %v456, %v450
      %v458 = vadd.f32 %v457, 1e-05
      %v459 = vrsqrt.pop %v458
      %v460 = vmul.f32 %v459, %v458
      %v461 = vmul.f32 %v460, %v459
      %v462 = vmul.f32 0.5, %v461
      %v463 = vsub.f32 1.5, %v462
      %v464 = vmul.f32 %v459, %v463
      %vm465 = vweird.f32 %v458
      %vm466 = vweird.f32 %v459
      %vm467 = vmor %vm465, %vm466
      %v468 = vsel %vm467, %v459, %v464
      %v469 = vmul.f32 %v452, %v468
      %v471 = vperm.slane %v438, 0
      %v473 = vmul.f32 %v469, %v471
      %v475 = vperm.slane %v439, 0
      %v477 = vadd.f32 %v473, %v475
      %v478 = vpack.c.bf16 %v477, %v477
      %v479 = vld [vmem:[%s3] sm:$0xf]
      %v480 = vld [vmem:[%s3 + $0x4] sm:$0xf]
      %v481 = vld [vmem:[%s3 + $0x8] sm:$0xf]
      %v482 = vld [vmem:[%s3 + $0xc] sm:$0xf]
      %v483 = vld [vmem:[%s4] sm:$0x1]
      %v485 = vperm.slane %v483, 0
      %v491 = vunpack.c.l.b16 %v479
      %v492 = vunpack.c.l.b16 %v480
      %v493 = vunpack.c.l.b16 %v481
      %v494 = vunpack.c.l.b16 %v482
      %v495 = vpack.c.b16 %v492, %v491
      %v496 = vpack.c.b16 %v494, %v493
      %v500 = vsel %vm440, %v478, 0
      %502 = vmatpush.bf16.msra.mxu0 0
      %503 = vmatpush.bf16.msra.mxu0 0
      %504 = vmatpush.bf16.msra.mxu0 0
      %505 = vmatpush.bf16.msra.mxu0 0
      %506 = vmatpush.bf16.msra.mxu0 0
      %507 = vmatpush.bf16.msra.mxu0 0
      %508 = vmatpush.bf16.msra.mxu0 %v496
      %509 = vmatpush.bf16.msra.mxu0 %v495
      %510 = vmatmul.bf16.gmra.mxu0 %v500
      %v511 = vpop.f32.mrf.mxu0
      %v512 = vadd.f32 %v485, %v511
      %v513 = vpop.f32.mrf.mxu0
      %514 = vdwg.mxu0
      %516 = vrot.lane.b32.xlu0 %v512, 120
      %v517 = vpop.permute.xlu0 %516
      %519 = vrot.lane.b32.xlu0 %v512, 112
      %v520 = vpop.permute.xlu0 %519
      %522 = vrot.lane.b32.xlu0 %v512, 104
      %v523 = vpop.permute.xlu0 %522
      %v525 = vmul.f32 %v512, 0.35355338
      %v526 = vmul.f32 %v517, 0.35355338
      %v527 = vmul.f32 %v520, 0.35355338
      %v528 = vmul.f32 %v523, 0.35355338
      %v529 = vpack.c.bf16 %v525, %v525
      %v530 = vpack.c.bf16 %v526, %v526
      %v531 = vpack.c.bf16 %v527, %v527
      %v532 = vpack.c.bf16 %v528, %v528
      %v533 = vpack.c.bf16 %v512, %v512
      %v534 = vpack.c.bf16 %v517, %v517
      %v535 = vpack.c.bf16 %v520, %v520
      %v536 = vpack.c.bf16 %v523, %v523
      %v538 = vunpack.c.l.b16 %v533
      %v539 = vpack.c.b16 %v538, %v538
      %540 = vrot.lane.b32.xlu0 %v539, 96
      %v541 = vpop.permute.xlu0 %540
      %vm542 = vcmask 64512
      %v544 = vsel %vm542, %v529, 0
      %v547 = vsel %vm542, %v541, 0
      %549 = vmatpush.bf16.xpose.msra.mxu0 0
      %550 = vmatpush.bf16.xpose.msra.mxu0 0
      %551 = vmatpush.bf16.xpose.msra.mxu0 0
      %552 = vmatpush.bf16.xpose.msra.mxu0 0
      %553 = vmatpush.bf16.xpose.msra.mxu0 0
      %554 = vmatpush.bf16.xpose.msra.mxu0 0
      %555 = vmatpush.bf16.xpose.msra.mxu0 0
      %556 = vmatpush.bf16.xpose.msra.mxu0 %v547
      %557 = vmatmul.bf16.gmra.mxu0 %v544
      %v558 = vpop.f32.mrf.mxu0
      %v559 = vadd.f32 0.0, %v558
      %v560 = vpop.f32.mrf.mxu0
      %561 = vdwg.mxu0
      %v563 = vunpack.c.l.b16 %v534
      %v564 = vpack.c.b16 %v563, %v563
      %565 = vrot.lane.b32.xlu0 %v564, 96
      %v566 = vpop.permute.xlu0 %565
      %v568 = vsel %vm542, %v530, 0
      %v571 = vsel %vm542, %v566, 0
      %573 = vmatpush.bf16.xpose.msra.mxu0 0
      %574 = vmatpush.bf16.xpose.msra.mxu0 0
      %575 = vmatpush.bf16.xpose.msra.mxu0 0
      %576 = vmatpush.bf16.xpose.msra.mxu0 0
      %577 = vmatpush.bf16.xpose.msra.mxu0 0
      %578 = vmatpush.bf16.xpose.msra.mxu0 0
      %579 = vmatpush.bf16.xpose.msra.mxu0 0
      %580 = vmatpush.bf16.xpose.msra.mxu0 %v571
      %581 = vmatmul.bf16.gmra.mxu0 %v568
      %v582 = vpop.f32.mrf.mxu0
      %v583 = vadd.f32 0.0, %v582
      %v584 = vpop.f32.mrf.mxu0
      %585 = vdwg.mxu0
      %v587 = vunpack.c.l.b16 %v535
      %v588 = vpack.c.b16 %v587, %v587
      %589 = vrot.lane.b32.xlu0 %v588, 96
      %v590 = vpop.permute.xlu0 %589
      %v592 = vsel %vm542, %v531, 0
      %v595 = vsel %vm542, %v590, 0
      %597 = vmatpush.bf16.xpose.msra.mxu0 0
      %598 = vmatpush.bf16.xpose.msra.mxu0 0
      %599 = vmatpush.bf16.xpose.msra.mxu0 0
      %600 = vmatpush.bf16.xpose.msra.mxu0 0
      %601 = vmatpush.bf16.xpose.msra.mxu0 0
      %602 = vmatpush.bf16.xpose.msra.mxu0 0
      %603 = vmatpush.bf16.xpose.msra.mxu0 0
      %604 = vmatpush.bf16.xpose.msra.mxu0 %v595
      %605 = vmatmul.bf16.gmra.mxu0 %v592
      %v606 = vpop.f32.mrf.mxu0
      %v607 = vadd.f32 0.0, %v606
      %v608 = vpop.f32.mrf.mxu0
      %609 = vdwg.mxu0
      %v611 = vunpack.c.l.b16 %v536
      %v612 = vpack.c.b16 %v611, %v611
      %613 = vrot.lane.b32.xlu0 %v612, 96
      %v614 = vpop.permute.xlu0 %613
      %v616 = vsel %vm542, %v532, 0
      %v619 = vsel %vm542, %v614, 0
      %621 = vmatpush.bf16.xpose.msra.mxu0 0
      %622 = vmatpush.bf16.xpose.msra.mxu0 0
      %623 = vmatpush.bf16.xpose.msra.mxu0 0
      %624 = vmatpush.bf16.xpose.msra.mxu0 0
      %625 = vmatpush.bf16.xpose.msra.mxu0 0
      %626 = vmatpush.bf16.xpose.msra.mxu0 0
      %627 = vmatpush.bf16.xpose.msra.mxu0 0
      %628 = vmatpush.bf16.xpose.msra.mxu0 %v619
      %629 = vmatmul.bf16.gmra.mxu0 %v616
      %v630 = vpop.f32.mrf.mxu0
      %v631 = vadd.f32 0.0, %v630
      %v632 = vpop.f32.mrf.mxu0
      %633 = vdwg.mxu0
      %v634 = vlaneseq
      %v635 = vshrl.u32 %v634, 7
      %v636 = vlaneseq
      %v637 = vand.u32 %v636, 127
      %vm638 = vcmp.le.s32.totalorder %v637, %v635
      %v639 = vsel %vm638, %v559, -1e+30
      %v640 = vsel %vm638, %v583, -1e+30
      %v641 = vsel %vm638, %v607, -1e+30
      %v642 = vsel %vm638, %v631, -1e+30
      %v643 = vsel %vm542, %v639, -inf
      %644 = vmax.xlane.f32.xlu0 %v643
      %v645 = vpop.xlane.xlu0 %644
      %v646 = vsel %vm542, %v640, -inf
      %647 = vmax.xlane.f32.xlu0 %v646
      %v648 = vpop.xlane.xlu0 %647
      %v649 = vsel %vm542, %v641, -inf
      %650 = vmax.xlane.f32.xlu0 %v649
      %v651 = vpop.xlane.xlu0 %650
      %v652 = vsel %vm542, %v642, -inf
      %653 = vmax.xlane.f32.xlu0 %v652
      %v654 = vpop.xlane.xlu0 %653
      %v655 = vsub.f32 %v639, %v645
      %v656 = vsub.f32 %v640, %v648
      %v657 = vsub.f32 %v641, %v651
      %v658 = vsub.f32 %v642, %v654
      %v659 = vmul.f32 %v655, 1.442695
      %v660 = vpow.pop %v659
      %v661 = vmul.f32 %v656, 1.442695
      %v662 = vpow.pop %v661
      %v663 = vmul.f32 %v657, 1.442695
      %v664 = vpow.pop %v663
      %v665 = vmul.f32 %v658, 1.442695
      %v666 = vpow.pop %v665
      %v667 = vsel %vm542, %v660, 0.0
      %668 = vadd.xlane.f32.xlu0 %v667
      %v669 = vpop.xlane.xlu0 %668
      %v670 = vsel %vm542, %v662, 0.0
      %671 = vadd.xlane.f32.xlu0 %v670
      %v672 = vpop.xlane.xlu0 %671
      %v673 = vsel %vm542, %v664, 0.0
      %674 = vadd.xlane.f32.xlu0 %v673
      %v675 = vpop.xlane.xlu0 %674
      %v676 = vsel %vm542, %v666, 0.0
      %677 = vadd.xlane.f32.xlu0 %v676
      %v678 = vpop.xlane.xlu0 %677
      %v679 = vpack.c.bf16 %v660, %v660
      %v680 = vpack.c.bf16 %v662, %v662
      %v681 = vpack.c.bf16 %v664, %v664
      %v682 = vpack.c.bf16 %v666, %v666
      %683 = vrot.lane.b32.xlu0 %v539, 64
      %v684 = vpop.permute.xlu0 %683
      %v686 = vsel %vm542, %v679, 0
      %vm688 = vcmask 1043456
      %v690 = vsel %vm688, %v684, 0
      %692 = vmatpush.bf16.msra.mxu0 0
      %693 = vmatpush.bf16.msra.mxu0 0
      %694 = vmatpush.bf16.msra.mxu0 0
      %695 = vmatpush.bf16.msra.mxu0 0
      %696 = vmatpush.bf16.msra.mxu0 0
      %697 = vmatpush.bf16.msra.mxu0 0
      %698 = vmatpush.bf16.msra.mxu0 0
      %699 = vmatpush.bf16.msra.mxu0 %v690
      %700 = vmatmul.bf16.gmra.mxu0 %v686
      %v701 = vpop.f32.mrf.mxu0
      %v702 = vadd.f32 0.0, %v701
      %v703 = vpop.f32.mrf.mxu0
      %704 = vdwg.mxu0
      %705 = vrot.lane.b32.xlu0 %v564, 64
      %v706 = vpop.permute.xlu0 %705
      %v708 = vsel %vm542, %v680, 0
      %v711 = vsel %vm688, %v706, 0
      %713 = vmatpush.bf16.msra.mxu0 0
      %714 = vmatpush.bf16.msra.mxu0 0
      %715 = vmatpush.bf16.msra.mxu0 0
      %716 = vmatpush.bf16.msra.mxu0 0
      %717 = vmatpush.bf16.msra.mxu0 0
      %718 = vmatpush.bf16.msra.mxu0 0
      %719 = vmatpush.bf16.msra.mxu0 0
      %720 = vmatpush.bf16.msra.mxu0 %v711
      %721 = vmatmul.bf16.gmra.mxu0 %v708
      %v722 = vpop.f32.mrf.mxu0
      %v723 = vadd.f32 0.0, %v722
      %v724 = vpop.f32.mrf.mxu0
      %725 = vdwg.mxu0
      %726 = vrot.lane.b32.xlu0 %v588, 64
      %v727 = vpop.permute.xlu0 %726
      %v729 = vsel %vm542, %v681, 0
      %v732 = vsel %vm688, %v727, 0
      %734 = vmatpush.bf16.msra.mxu0 0
      %735 = vmatpush.bf16.msra.mxu0 0
      %736 = vmatpush.bf16.msra.mxu0 0
      %737 = vmatpush.bf16.msra.mxu0 0
      %738 = vmatpush.bf16.msra.mxu0 0
      %739 = vmatpush.bf16.msra.mxu0 0
      %740 = vmatpush.bf16.msra.mxu0 0
      %741 = vmatpush.bf16.msra.mxu0 %v732
      %742 = vmatmul.bf16.gmra.mxu0 %v729
      %v743 = vpop.f32.mrf.mxu0
      %v744 = vadd.f32 0.0, %v743
      %v745 = vpop.f32.mrf.mxu0
      %746 = vdwg.mxu0
      %747 = vrot.lane.b32.xlu0 %v612, 64
      %v748 = vpop.permute.xlu0 %747
      %v750 = vsel %vm542, %v682, 0
      %v753 = vsel %vm688, %v748, 0
      %755 = vmatpush.bf16.msra.mxu0 0
      %756 = vmatpush.bf16.msra.mxu0 0
      %757 = vmatpush.bf16.msra.mxu0 0
      %758 = vmatpush.bf16.msra.mxu0 0
      %759 = vmatpush.bf16.msra.mxu0 0
      %760 = vmatpush.bf16.msra.mxu0 0
      %761 = vmatpush.bf16.msra.mxu0 0
      %762 = vmatpush.bf16.msra.mxu0 %v753
      %763 = vmatmul.bf16.gmra.mxu0 %v750
      %v764 = vpop.f32.mrf.mxu0
      %v765 = vadd.f32 0.0, %v764
      %v766 = vpop.f32.mrf.mxu0
      %767 = vdwg.mxu0
      %v768 = vrcp.pop %v669
      %v769 = vrcp.pop %v672
      %v770 = vrcp.pop %v675
      %v771 = vrcp.pop %v678
      %v772 = vmul.f32 %v702, %v768
      %v773 = vmul.f32 %v723, %v769
      %v774 = vmul.f32 %v744, %v770
      %v775 = vmul.f32 %v765, %v771
      %v776 = vpack.c.bf16 %v772, %v772
      %v777 = vpack.c.bf16 %v773, %v773
      %v778 = vpack.c.bf16 %v774, %v774
      %v779 = vpack.c.bf16 %v775, %v775
      %v780 = vld [vmem:[%s5] sm:$0xf]
      %v781 = vld [vmem:[%s5 + $0x4] sm:$0xf]
      %v782 = vld [vmem:[%s5 + $0x8] sm:$0xf]
      %v783 = vld [vmem:[%s5 + $0xc] sm:$0xf]
      %v785 = vsel %vm542, %v776, 0
      %v788 = vsel %vm688, %v780, 0
      %790 = vmatpush.bf16.msra.mxu0 0
      %791 = vmatpush.bf16.msra.mxu0 0
      %792 = vmatpush.bf16.msra.mxu0 0
      %793 = vmatpush.bf16.msra.mxu0 0
      %794 = vmatpush.bf16.msra.mxu0 0
      %795 = vmatpush.bf16.msra.mxu0 0
      %796 = vmatpush.bf16.msra.mxu0 0
      %797 = vmatpush.bf16.msra.mxu0 %v788
      %798 = vmatmul.bf16.gmra.mxu0 %v785
      %v799 = vpop.f32.mrf.mxu0
      %v800 = vadd.f32 0.0, %v799
      %v801 = vpop.f32.mrf.mxu0
      %802 = vdwg.mxu0
      %v804 = vsel %vm542, %v777, 0
      %v807 = vsel %vm688, %v781, 0
      %809 = vmatpush.bf16.msra.mxu0 0
      %810 = vmatpush.bf16.msra.mxu0 0
      %811 = vmatpush.bf16.msra.mxu0 0
      %812 = vmatpush.bf16.msra.mxu0 0
      %813 = vmatpush.bf16.msra.mxu0 0
      %814 = vmatpush.bf16.msra.mxu0 0
      %815 = vmatpush.bf16.msra.mxu0 0
      %816 = vmatpush.bf16.msra.mxu0 %v807
      %817 = vmatmul.bf16.gmra.mxu0 %v804
      %v818 = vpop.f32.mrf.mxu0
      %v819 = vadd.f32 0.0, %v818
      %v820 = vpop.f32.mrf.mxu0
      %821 = vdwg.mxu0
      %v823 = vsel %vm542, %v778, 0
      %v826 = vsel %vm688, %v782, 0
      %828 = vmatpush.bf16.msra.mxu0 0
      %829 = vmatpush.bf16.msra.mxu0 0
      %830 = vmatpush.bf16.msra.mxu0 0
      %831 = vmatpush.bf16.msra.mxu0 0
      %832 = vmatpush.bf16.msra.mxu0 0
      %833 = vmatpush.bf16.msra.mxu0 0
      %834 = vmatpush.bf16.msra.mxu0 0
      %835 = vmatpush.bf16.msra.mxu0 %v826
      %836 = vmatmul.bf16.gmra.mxu0 %v823
      %v837 = vpop.f32.mrf.mxu0
      %v838 = vadd.f32 0.0, %v837
      %v839 = vpop.f32.mrf.mxu0
      %840 = vdwg.mxu0
      %v842 = vsel %vm542, %v779, 0
      %v845 = vsel %vm688, %v783, 0
      %847 = vmatpush.bf16.msra.mxu0 0
      %848 = vmatpush.bf16.msra.mxu0 0
      %849 = vmatpush.bf16.msra.mxu0 0
      %850 = vmatpush.bf16.msra.mxu0 0
      %851 = vmatpush.bf16.msra.mxu0 0
      %852 = vmatpush.bf16.msra.mxu0 0
      %853 = vmatpush.bf16.msra.mxu0 0
      %854 = vmatpush.bf16.msra.mxu0 %v845
      %855 = vmatmul.bf16.gmra.mxu0 %v842
      %v856 = vpop.f32.mrf.mxu0
      %v857 = vadd.f32 0.0, %v856
      %v858 = vpop.f32.mrf.mxu0
      %859 = vdwg.mxu0
      %v860 = vsel %vm440, %v800, 0.0
      %v861 = vsel %vm440, %v819, 0.0
      %v862 = vadd.f32 %v860, %v861
      %v863 = vsel %vm440, %v838, 0.0
      %v864 = vadd.f32 %v862, %v863
      %v865 = vsel %vm440, %v857, 0.0
      %v866 = vadd.f32 %v864, %v865
      %v867 = vld [vmem:[%s6] sm:$0x1]
      %v869 = vperm.slane %v867, 0
      %v871 = vadd.f32 %v866, %v869
      %v872 = vadd.f32 %v437, %v871
      %v873 = vld [vmem:[%s7] sm:$0x1]
      %v874 = vld [vmem:[%s8] sm:$0x1]
      %v875 = vsel %vm440, %v872, 0.0
      %876 = vadd.xlane.f32.xlu0 %v875
      %v877 = vpop.xlane.xlu0 %876
      %v878 = vmul.f32 %v877, %v450
      %v879 = vsub.f32 %v872, %v878
      %v880 = vmul.f32 %v879, %v879
      %v881 = vsel %vm440, %v880, 0.0
      %882 = vadd.xlane.f32.xlu0 %v881
      %v883 = vpop.xlane.xlu0 %882
      %v884 = vmul.f32 %v883, %v450
      %v885 = vadd.f32 %v884, 1e-05
      %v886 = vrsqrt.pop %v885
      %v887 = vmul.f32 %v886, %v885
      %v888 = vmul.f32 %v887, %v886
      %v889 = vmul.f32 0.5, %v888
      %v890 = vsub.f32 1.5, %v889
      %v891 = vmul.f32 %v886, %v890
      %vm892 = vweird.f32 %v885
      %vm893 = vweird.f32 %v886
      %vm894 = vmor %vm892, %vm893
      %v895 = vsel %vm894, %v886, %v891
      %v896 = vmul.f32 %v879, %v895
      %v898 = vperm.slane %v873, 0
      %v900 = vmul.f32 %v896, %v898
      %v902 = vperm.slane %v874, 0
      %v904 = vadd.f32 %v900, %v902
      %v905 = vpack.c.bf16 %v904, %v904
      %v906 = vld [vmem:[%s9] sm:$0xf]
      %v907 = vld [vmem:[%s9 + $0x4] sm:$0xf]
      %v908 = vld [vmem:[%s9 + $0x8] sm:$0xf]
      %v909 = vld [vmem:[%s9 + $0xc] sm:$0xf]
      %v910 = vld [vmem:[%s10] sm:$0x1]
      %v912 = vperm.slane %v910, 0
      %v918 = vunpack.c.l.b16 %v906
      %v919 = vunpack.c.l.b16 %v907
      %v920 = vunpack.c.l.b16 %v908
      %v921 = vunpack.c.l.b16 %v909
      %v922 = vpack.c.b16 %v919, %v918
      %v923 = vpack.c.b16 %v921, %v920
      %v927 = vsel %vm440, %v905, 0
      %929 = vmatpush.bf16.msra.mxu0 0
      %930 = vmatpush.bf16.msra.mxu0 0
      %931 = vmatpush.bf16.msra.mxu0 0
      %932 = vmatpush.bf16.msra.mxu0 0
      %933 = vmatpush.bf16.msra.mxu0 0
      %934 = vmatpush.bf16.msra.mxu0 0
      %935 = vmatpush.bf16.msra.mxu0 %v923
      %936 = vmatpush.bf16.msra.mxu0 %v922
      %937 = vmatmul.bf16.gmra.mxu0 %v927
      %v938 = vpop.f32.mrf.mxu0
      %v939 = vadd.f32 %v912, %v938
      %v940 = vpop.f32.mrf.mxu0
      %941 = vdwg.mxu0
      %v942 = vmul.f32 %v939, 0.5
      %v943 = vmul.f32 %v939, 0.044715
      %v944 = vmul.f32 %v943, %v939
      %v945 = vmul.f32 %v944, %v939
      %v946 = vadd.f32 %v939, %v945
      %v947 = vmul.f32 %v946, 0.7978846
      %v948 = vtanh.pop %v947
      %v949 = vadd.f32 %v948, 1.0
      %v950 = vmul.f32 %v942, %v949
      %v951 = vpack.c.bf16 %v950, %v950
      %v952 = vld [vmem:[%s11] sm:$0xf]
      %v953 = vld [vmem:[%s11 + $0x4] sm:$0xf]
      %v954 = vld [vmem:[%s11 + $0x8] sm:$0xf]
      %v955 = vld [vmem:[%s11 + $0xc] sm:$0xf]
      %v956 = vld [vmem:[%s11 + $0x10] sm:$0xf]
      %v957 = vld [vmem:[%s11 + $0x14] sm:$0xf]
      %v958 = vld [vmem:[%s11 + $0x18] sm:$0xf]
      %v959 = vld [vmem:[%s11 + $0x1c] sm:$0xf]
      %v960 = vld [vmem:[%s11 + $0x20] sm:$0xf]
      %v961 = vld [vmem:[%s11 + $0x24] sm:$0xf]
      %v962 = vld [vmem:[%s11 + $0x28] sm:$0xf]
      %v963 = vld [vmem:[%s11 + $0x2c] sm:$0xf]
      %v964 = vld [vmem:[%s11 + $0x30] sm:$0xf]
      %v965 = vld [vmem:[%s11 + $0x34] sm:$0xf]
      %v966 = vld [vmem:[%s11 + $0x38] sm:$0xf]
      %v967 = vld [vmem:[%s11 + $0x3c] sm:$0xf]
      %v968 = vld [vmem:[%s12] sm:$0x1]
      %v970 = vperm.slane %v968, 0
      %v988 = vunpack.c.l.b16 %v952
      %v989 = vunpack.c.l.b16 %v953
      %v990 = vunpack.c.l.b16 %v954
      %v991 = vunpack.c.l.b16 %v955
      %v992 = vunpack.c.l.b16 %v956
      %v993 = vunpack.c.l.b16 %v957
      %v994 = vunpack.c.l.b16 %v958
      %v995 = vunpack.c.l.b16 %v959
      %v996 = vunpack.c.l.b16 %v960
      %v997 = vunpack.c.l.b16 %v961
      %v998 = vunpack.c.l.b16 %v962
      %v999 = vunpack.c.l.b16 %v963
      %v1000 = vunpack.c.l.b16 %v964
      %v1001 = vunpack.c.l.b16 %v965
      %v1002 = vunpack.c.l.b16 %v966
      %v1003 = vunpack.c.l.b16 %v967
      %v1004 = vpack.c.b16 %v989, %v988
      %v1005 = vpack.c.b16 %v991, %v990
      %v1006 = vpack.c.b16 %v993, %v992
      %v1007 = vpack.c.b16 %v995, %v994
      %v1008 = vpack.c.b16 %v997, %v996
      %v1009 = vpack.c.b16 %v999, %v998
      %v1010 = vpack.c.b16 %v1001, %v1000
      %v1011 = vpack.c.b16 %v1003, %v1002
      %1020 = vmatpush.bf16.msra.mxu0 %v1011
      %1021 = vmatpush.bf16.msra.mxu0 %v1010
      %1022 = vmatpush.bf16.msra.mxu0 %v1009
      %1023 = vmatpush.bf16.msra.mxu0 %v1008
      %1024 = vmatpush.bf16.msra.mxu0 %v1007
      %1025 = vmatpush.bf16.msra.mxu0 %v1006
      %1026 = vmatpush.bf16.msra.mxu0 %v1005
      %1027 = vmatpush.bf16.msra.mxu0 %v1004
      %1028 = vmatmul.bf16.gmra.mxu0 %v951
      %v1029 = vpop.f32.mrf.mxu0
      %v1030 = vadd.f32 %v970, %v1029
      %v1031 = vpop.f32.mrf.mxu0
      %1032 = vdwg.mxu0
      %v1033 = vadd.f32 %v872, %v1030
      %1034 = vst.msk [vmem:[%s435] sm:$0xff] %vm440, %v1033
      %p1035 = scmp.lt.s32.totalorder %s24, 1
      %s1036 = scalar_select %p1035, %s24, 1
      %s1037 = smul.addr %s1036, 8
      %s1038 = scalar_lea.vmem %s13, %s1037
      // Predicated region
      $region73: #{_lambda_.3} parent=71 // pred_check
        %p1039 = pneg %p320
      $region74: #{_lambda_.3} parent=71 // pred_check_branch
        %1041 = sbr.rel (%p1039) target = $region76
      $region75: #{_lambda_.3} parent=71 // pred_region
        _
      $region76: #{_lambda_.3} parent=71 // pred_fallthru
        _
    $region72: #{_lambda_.3} parent=5 // pred_fallthru
      _
    %p1042 = scmp.le.s32.totalorder 2, %s19
    // Predicated region
    $region77: #{_lambda_.3} parent=5 // pred_check
      %p1043 = pneg %p1042
    $region78: #{_lambda_.3} parent=5 // pred_check_branch
      %1045 = sbr.rel (%p1043) target = $region80
    $region79: #{_lambda_.3} parent=5 // pred_region
      %s1046 = ssub.s32 %s19, 2
      // Predicated region
      $region81: #{_lambda_.3} parent=79 // pred_check
        %p1047 = pneg %p326
      $region82: #{_lambda_.3} parent=79 // pred_check_branch
        %1049 = sbr.rel (%p1047) target = $region84
      $region83: #{_lambda_.3} parent=79 // pred_region
        %p1050 = scmp.lt.s32.totalorder %s25, 1
        %s1051 = scalar_select %p1050, %s25, 1
        %s1052 = smul.addr %s1051, 8
        %s1053 = scalar_lea.vmem %s13, %s1052
      $region84: #{_lambda_.3} parent=79 // pred_fallthru
        _
    $region80: #{_lambda_.3} parent=5 // pred_fallthru
      _
  $region6: #{_lambda_.3} parent=0 // loop_footer
    %s23 = sadd.s32 1, %s19
  $region7: #{_lambda_.3} parent=0 // loop_footer_branch
    %18 = sbr.rel target = $region3
  $region8: #{_lambda_.3} parent=0 // loop_exit
    _

</llo_original>
